<compile_context>
chip_gen: v5e
topology: v5e:2x2
jax: 0.10.0
libtpu: 0.0.40
codegen_flags: <defaults>
</compile_context>

<pallas_src>
import jax
import jax.numpy as jnp
from jax.experimental import pallas as pl
from jax.experimental.pallas import tpu as pltpu

LANES = 128
TILE_R = 512                       # rows per grid step -> 512*128 = 64K elems / block
TILE_ELEMS = TILE_R * LANES
PAD_LOGIT = -1e9                   # finite sentinel: bce(x=-1e9, t=0) == 0 exactly


# ----------------------------- layout helpers (wrapper-side, XLA) ----------------

def _pixel_shuffle(x, r):
    if r == 1:
        return x
    b, c, h, w = x.shape
    x = x.reshape(b, c // (r * r), r, r, h, w)
    x = x.transpose(0, 1, 4, 2, 5, 3)
    return x.reshape(b, c // (r * r), h * r, w * r)


def _pixel_unshuffle(x, r):
    if r == 1:
        return x
    b, c, h, w = x.shape
    x = x.reshape(b, c, h // r, r, w // r, r)
    x = x.transpose(0, 1, 3, 5, 2, 4)
    return x.reshape(b, c * r * r, h // r, w // r)


# ----------------------------- Pallas kernel --------------------------------------

def _wbce_kernel(scale_ref, x_ref, t_ref, out_ref, acc_ref):
    """Streams (TILE_R, 128) blocks of logits/targets, accumulates
    scale[block] * BCE(x, t) elementwise into a f32 VMEM accumulator, and does the
    single cross-lane reduction only on the final grid step."""
    i = pl.program_id(0)

    @pl.when(i == 0)
    def _init():
        acc_ref[...] = jnp.zeros_like(acc_ref)

    x = x_ref[...].astype(jnp.float32)
    t = t_ref[...].astype(jnp.float32)
    # Numerically stable BCE-with-logits (PyTorch formulation):
    #   max(x, 0) - x*t + log1p(exp(-|x|))
    bce = jnp.maximum(x, 0.0) - x * t + jnp.log1p(jnp.exp(-jnp.abs(x)))
    acc_ref[...] += bce * scale_ref[i]          # per-block weight/N from SMEM

    @pl.when(i == pl.num_programs(0) - 1)
    def _finalize():
        out_ref[0] = jnp.sum(acc_ref[...])


# ----------------------------- wrapper --------------------------------------------

def wpure_bce_loss(outputs, targets, *, weights=(1.0, 0.5, 0.7, 0.9, 1.1),
                   bce_weight=0.5, dice_weight=0.5):
    """Equivalent of wPure_BCELoss(...).forward(outputs, targets).

    outputs : sequence of multi-scale logits [(B, Ci, hi, wi), ...]
    targets : (B, H, W) saliency targets (thresholded at 0.5 inside).
    Returns the scalar weighted sum of per-stage BCE-with-logits means.
    """
    if bce_weight == 0 and dice_weight == 0:
        raise ValueError(
            "Both bce_weight and dice_weight cannot be equal to 0 at the same time.")
    if bce_weight == 0:
        # TODO(synk): the original module's bce_weight==0 branch calls self.dice_loss,
        # which is undefined in the PyTorch source; not translated.
        raise NotImplementedError("bce_weight == 0 path is not implemented.")

    full_w = targets.shape[-1]
    target01 = targets[:, None, :, :] > 0.5          # bool (B, 1, H, W)

    xs, ts, block_scales = [], [], []
    for i, (pred, w) in enumerate(zip(outputs, weights)):
        scale = full_w // pred.shape[-1]
        if i == 0:
            x = jnp.max(_pixel_shuffle(pred, scale), axis=1, keepdims=True)
            t = target01
        else:
            x = pred
            # TODO(synk): for scale == 1 with count > 0 the original torch code reuses
            # the previous stage's pixel-unshuffled target; we use the full-res target.
            t = _pixel_unshuffle(target01, scale) if scale > 1 else target01
        t = t.astype(x.dtype)

        n = x.size
        n_blocks = (n + TILE_ELEMS - 1) // TILE_ELEMS
        pad = n_blocks * TILE_ELEMS - n
        # Sentinel padding (finite!) so the pad region contributes exactly 0 BCE.
        xs.append(jnp.pad(x.reshape(-1), (0, pad), constant_values=PAD_LOGIT))
        ts.append(jnp.pad(t.reshape(-1), (0, pad), constant_values=0))
        block_scales.extend([float(w) / float(n)] * n_blocks)

    x_all = jnp.concatenate(xs).reshape(-1, LANES)    # (rows, 128), native dtype
    t_all = jnp.concatenate(ts).reshape(-1, LANES)
    scales = jnp.asarray(block_scales, dtype=jnp.float32)
    num_blocks = x_all.shape[0] // TILE_R

    n_elems = int(x_all.size)
    cost = pl.CostEstimate(
        flops=8 * n_elems,
        transcendentals=2 * n_elems,                  # exp + log1p per element
        bytes_accessed=2 * n_elems * x_all.dtype.itemsize)

    tile_spec = pl.BlockSpec((TILE_R, LANES), lambda i, s: (i, 0))
    out = pl.pallas_call(
        _wbce_kernel,
        out_shape=jax.ShapeDtypeStruct((1,), jnp.float32),
        grid_spec=pltpu.PrefetchScalarGridSpec(
            num_scalar_prefetch=1,
            grid=(num_blocks,),
            in_specs=[tile_spec, tile_spec],
            out_specs=pl.BlockSpec(memory_space=pltpu.SMEM),
            scratch_shapes=[pltpu.VMEM((TILE_R, LANES), jnp.float32)],
        ),
        compiler_params=pltpu.CompilerParams(
            dimension_semantics=("arbitrary",)),
        cost_estimate=cost,
    )(scales, x_all, t_all)

    return out[0]


# ----------------------------- pure-JAX reference ----------------------------------

def _reference(outputs, targets, weights):
    target01 = (targets[:, None, :, :] > 0.5).astype(jnp.float32)
    total = 0.0
    for i, (pred, w) in enumerate(zip(outputs, weights)):
        scale = targets.shape[-1] // pred.shape[-1]
        if i == 0:
            x = jnp.max(_pixel_shuffle(pred, scale), axis=1, keepdims=True)
            t = target01
        else:
            x = pred
            t = _pixel_unshuffle(target01, scale) if scale > 1 else target01
        x = x.astype(jnp.float32)
        t = t.astype(jnp.float32)
        bce = jnp.mean(jnp.maximum(x, 0.0) - x * t + jnp.log1p(jnp.exp(-jnp.abs(x))))
        total = total + w * bce
    return total


if __name__ == "__main__":
    key = jax.random.PRNGKey(0)
    keys = jax.random.split(key, 6)
    B, H, W = 2, 16, 16
    weights = (1.0, 0.5, 0.7, 0.9, 1.1)
    # Multi-scale saliency logits matching what the forward implies:
    #   stage 0: (B, C*s0^2, H/s0, W/s0) -> pixel_shuffle(4) + channel max
    #   stage i: (B, s_i^2, H/s_i, W/s_i) vs pixel_unshuffle(target, s_i)
    outputs = [
        jax.random.normal(keys[0], (B, 32, 4, 4), jnp.float32) * 2.0,    # scale 4
        jax.random.normal(keys[1], (B, 4, 8, 8), jnp.float32) * 2.0,     # scale 2
        jax.random.normal(keys[2], (B, 16, 4, 4), jnp.float32) * 2.0,    # scale 4
        jax.random.normal(keys[3], (B, 64, 2, 2), jnp.float32) * 2.0,    # scale 8
        jax.random.normal(keys[4], (B, 256, 1, 1), jnp.float32) * 2.0,   # scale 16
    ]
    targets = jax.random.uniform(keys[5], (B, H, W), dtype=jnp.float32)

    loss = wpure_bce_loss(outputs, targets, weights=weights)
    jax.block_until_ready(loss)

    ref = _reference(outputs, targets, weights)
    assert abs(float(loss) - float(ref)) < 1e-4, (float(loss), float(ref))

    print("KERNEL_OK")
</pallas_src>

<mosaic_0001>
module attributes {stable_mosaic.version = 11 : i64} {
  func.func @_wbce_kernel(%arg0: i32, %arg1: memref<5xf32, #tpu.memory_space<smem>>, %arg2: memref<512x128xf32, #tpu.memory_space<vmem>>, %arg3: memref<512x128xf32, #tpu.memory_space<vmem>>, %arg4: memref<1xf32, #tpu.memory_space<smem>>, %arg5: memref<512x128xf32, #tpu.memory_space<vmem>>) attributes {dimension_semantics = [#tpu.dimension_semantics<arbitrary>], iteration_bounds = array<i64: 5>, scalar_prefetch = 1 : i64, scratch_operands = 1 : i64, tpu.core_type = #tpu.core_type<tc>, window_params = [{transform_indices = @transform_0, window_bounds = array<i64: 512, 128>}, {transform_indices = @transform_1, window_bounds = array<i64: 512, 128>}, {transform_indices = @transform_2, window_bounds = array<i64: 1>}]} {
    %c0_i32 = arith.constant 0 : i32
    %0 = arith.cmpi eq, %arg0, %c0_i32 : i32
    %1 = arith.extui %0 : i1 to i32
    %c0_i32_0 = arith.constant 0 : i32
    %2 = arith.cmpi ne, %1, %c0_i32_0 : i32
    scf.if %2 {
      %cst_10 = arith.constant 0.000000e+00 : f32
      %25 = vector.broadcast %cst_10 : f32 to vector<512x128xf32>
      %c0_11 = arith.constant 0 : index
      %c0_12 = arith.constant 0 : index
      %26 = vector.load %arg5[%c0_11, %c0_12] : memref<512x128xf32, #tpu.memory_space<vmem>>, vector<512x128xf32>
      tpu.vector_store %arg5[%c0_11, %c0_12], %25 {strides = array<i32>} : memref<512x128xf32, #tpu.memory_space<vmem>>, vector<512x128xf32>,
    } else {
    }
    %c0 = arith.constant 0 : index
    %c0_1 = arith.constant 0 : index
    %3 = vector.load %arg2[%c0, %c0_1] : memref<512x128xf32, #tpu.memory_space<vmem>>, vector<512x128xf32>
    %c0_2 = arith.constant 0 : index
    %c0_3 = arith.constant 0 : index
    %4 = vector.load %arg3[%c0_2, %c0_3] : memref<512x128xf32, #tpu.memory_space<vmem>>, vector<512x128xf32>
    %cst = arith.constant 0.000000e+00 : f32
    %5 = vector.broadcast %cst : f32 to vector<512x128xf32>
    %6 = arith.maximumf %3, %5 : vector<512x128xf32>
    %7 = arith.mulf %3, %4 : vector<512x128xf32>
    %8 = arith.subf %6, %7 : vector<512x128xf32>
    %9 = math.absf %3 : vector<512x128xf32>
    %cst_4 = arith.constant 0.000000e+00 : f32
    %10 = vector.broadcast %cst_4 : f32 to vector<512x128xf32>
    %11 = arith.subf %10, %9 : vector<512x128xf32>
    %12 = math.exp %11 : vector<512x128xf32>
    %13 = math.log1p %12 : vector<512x128xf32>
    %14 = arith.addf %8, %13 : vector<512x128xf32>
    %c0_5 = arith.constant 0 : index
    %c0_6 = arith.constant 0 : index
    %15 = vector.load %arg5[%c0_5, %c0_6] : memref<512x128xf32, #tpu.memory_space<vmem>>, vector<512x128xf32>
    %16 = arith.index_cast %arg0 : i32 to index
    %17 = memref.load %arg1[%16] : memref<5xf32, #tpu.memory_space<smem>>
    %18 = vector.broadcast %17 : f32 to vector<512x128xf32>
    %19 = arith.mulf %14, %18 : vector<512x128xf32>
    %20 = arith.addf %15, %19 : vector<512x128xf32>
    %c0_7 = arith.constant 0 : index
    %c0_8 = arith.constant 0 : index
    %21 = vector.load %arg5[%c0_7, %c0_8] : memref<512x128xf32, #tpu.memory_space<vmem>>, vector<512x128xf32>
    tpu.vector_store %arg5[%c0_7, %c0_8], %20 {strides = array<i32>} : memref<512x128xf32, #tpu.memory_space<vmem>>, vector<512x128xf32>,
    %c4_i32 = arith.constant 4 : i32
    %22 = arith.cmpi eq, %arg0, %c4_i32 : i32
    %23 = arith.extui %22 : i1 to i32
    %c0_i32_9 = arith.constant 0 : i32
    %24 = arith.cmpi ne, %23, %c0_i32_9 : i32
    scf.if %24 {
      %c0_10 = arith.constant 0 : index
      %c0_11 = arith.constant 0 : index
      %25 = vector.load %arg5[%c0_10, %c0_11] : memref<512x128xf32, #tpu.memory_space<vmem>>, vector<512x128xf32>
      %26 = vector.shape_cast %25 : vector<512x128xf32> to vector<1x512x128xf32>
      %cst_12 = arith.constant dense<0.000000e+00> : vector<1xf32>
      %27 = vector.multi_reduction <add>, %26, %cst_12 [1, 2] : vector<1x512x128xf32> to vector<1xf32>
      %28 = vector.shape_cast %27 : vector<1xf32> to vector<1x1x1xf32>
      %29 = vector.extract %28[0, 0, 0] : f32 from vector<1x1x1xf32>
      %c0_13 = arith.constant 0 : index
      %30 = memref.load %arg4[%c0_13] : memref<1xf32, #tpu.memory_space<smem>>
      memref.store %29, %arg4[%c0_13] : memref<1xf32, #tpu.memory_space<smem>>
    } else {
    }
    return
  }
  func.func @transform_0(%arg0: i32, %arg1: memref<5xf32, #tpu.memory_space<smem>>) -> (i32, i32) {
    %c0_i32 = arith.constant 0 : i32
    %c0_i32_0 = arith.constant 0 : i32
    return %arg0, %c0_i32 : i32, i32
  }
  func.func @transform_1(%arg0: i32, %arg1: memref<5xf32, #tpu.memory_space<smem>>) -> (i32, i32) {
    %c0_i32 = arith.constant 0 : i32
    %c0_i32_0 = arith.constant 0 : i32
    return %arg0, %c0_i32 : i32, i32
  }
  func.func @transform_2(%arg0: i32, %arg1: memref<5xf32, #tpu.memory_space<smem>>) -> i32 {
    %c0_i32 = arith.constant 0 : i32
    %c0_i32_0 = arith.constant 0 : i32
    return %c0_i32 : i32
  }
}

</mosaic_0001>

<llo_original>
// kernel: tpu_custom_call.1
$region0: #{tpu_custom_call.1}
  #allocation0 [shape = 'u32[]', space=smem, size = 0x4, offset = 0x4, fixed_abs, tag = 'smem constant byte address 0x4 - core index']
  #allocation1 [shape = 'u32[72,128]{1,0:T(1,128)}', space=vmem, size = 0x9000, scoped, tag = 'internal scratch']
  #allocation2 [shape = 'f32[512,128]{1,0:T(8,128)}', space=vmem, size = 0x40000, scoped, tag = 'scratch operand']
  #allocation3 [shape = 's32[1]{0}', space=sflag, size = 0x4, scoped, tag = 'scoped memory for tpu_custom_call.1']
  #allocation4 [shape = 'u8[512]{0}', space=smem, size = 0x200, scoped, tag = 'prefetched SMEM operand 0']
  %s0 = inlined_call_operand.hbm [shape: f32[5], index: 0, kind: input, shape index: {}]
  %s1 = inlined_call_operand.hbm [shape: f32[2560,128], index: 1, kind: input, shape index: {}]
  %s2 = inlined_call_operand.hbm [shape: f32[2560,128], index: 2, kind: input, shape index: {}]
  %s3 = inlined_call_operand.hbm [shape: f32[1], index: 3, kind: output, shape index: {}]
  %s4 = sld [smem:[#allocation0]]
  $region57: #{tpu_custom_call.1} parent=0
    _
  %s6 = ssub.s32 1, %s4
  %s7 = scalar_select 0, %s6, %s4
  %s9 = sshll.u32 %s0, 4
  %s10 = int_to_ptr.hbm [resolvable:$true] %s9
  %12 = dma.hbm_to_smem %s10, 16, [#allocation4], [#allocation3]
  %14 = dma.done [#allocation3], 16
  %15 = sfence
  $region1: #{tpu_custom_call.1} parent=0
    #allocation5 [shape = 'u8[524288]{0}', space=vmem, size = 0x80000, scoped, tag = 'input window, operand 1']
    #allocation6 [shape = 's32[2]{0}', space=sflag, size = 0x8, scoped, tag = 'scoped memory for tpu_custom_call.1']
    #allocation7 [shape = 's32[2]{0}', space=sflag, size = 0x8, scoped, tag = 'scoped memory for tpu_custom_call.1']
    #allocation8 [shape = 'u8[524288]{0}', space=vmem, size = 0x80000, scoped, tag = 'input window, operand 2']
    #allocation9 [shape = 's32[2]{0}', space=sflag, size = 0x8, scoped, tag = 'scoped memory for tpu_custom_call.1']
    #allocation10 [shape = 'u8[512]{0}', space=smem, size = 0x200, scoped, tag = 'output window, operand 0, single buffered']
    %16 = vsyncpa [#allocation6], 0
    %s17 = scalar_lea.sflag [#allocation6], 1
    %18 = vsyncpa %s17, 0
    %19 = vsyncpa [#allocation9], 0
    %s20 = scalar_lea.sflag [#allocation9], 1
    %21 = vsyncpa %s20, 0
    %22 = vsyncpa [#allocation7], 0
    loop: start=0, step=1, limit=7
    $region2: #{tpu_custom_call.1} parent=1 // loop_pre_header
      _
    $region3: #{tpu_custom_call.1} parent=1 // loop_header
      %s24 = sphi 0, %s28
      %p25 = scmp.ge.s32.totalorder %s24, 7
      %s34 = sphi 0, %s36
      %s37 = sphi 0, %s34
      %s38 = sphi 0, %s37
      %s54 = sphi 0, %s38
      %s60 = sphi 0, %s62
      %s63 = sphi 0, %s60
      %s64 = sphi 0, %s63
      %s80 = sphi 0, %s64
      %s84 = sphi 0, %s84
      %s86 = sphi 0, %s84
      %s87 = sphi 0, %s86
      %s101 = sphi 0, %s87
    $region4: #{tpu_custom_call.1} parent=1 // loop_header_branch
      %27 = sbr.rel (%p25) target = $region8
    $region5: #{tpu_custom_call.1} parent=1 // loop_body
      %s29 = ssub.s32 %s24, 1
      %s30 = ssub.s32 %s24, 2
      %s31 = sadd.s32 %s24, 1
      %s32 = ssub.s32 %s24, %s31
      %p33 = scmp.eq.s32.totalorder %s32, 0
      %s35 = sadd.s32 %s34, 1
      %s36 = scalar_select %p33, %s34, %s35
      %p39 = pneg %p33
      %p40 = scmp.eq.s32.totalorder %s24, 4
      %p41 = por %p39, %p40
      %p42 = scmp.ne.s32.totalorder %s34, %s37
      %p43 = scmp.eq.s32.totalorder %s24, 0
      %p44 = por %p42, %p43
      %p45 = scmp.ne.s32.totalorder %s34, %s37
      %p46 = scmp.eq.s32.totalorder %s29, 4
      %p47 = por %p45, %p46
      %p48 = scmp.ne.s32.totalorder %s37, %s38
      %p49 = scmp.eq.s32.totalorder %s29, 0
      %p50 = por %p48, %p49
      %p51 = scmp.ne.s32.totalorder %s37, %s38
      %p52 = scmp.eq.s32.totalorder %s30, 4
      %p53 = por %p51, %p52
      %p55 = scmp.ne.s32.totalorder %s38, %s54
      %p56 = scmp.eq.s32.totalorder %s30, 0
      %p57 = por %p55, %p56
      %s58 = ssub.s32 %s24, %s31
      %p59 = scmp.eq.s32.totalorder %s58, 0
      %s61 = sadd.s32 %s60, 1
      %s62 = scalar_select %p59, %s60, %s61
      %p65 = pneg %p59
      %p66 = scmp.eq.s32.totalorder %s24, 4
      %p67 = por %p65, %p66
      %p68 = scmp.ne.s32.totalorder %s60, %s63
      %p69 = scmp.eq.s32.totalorder %s24, 0
      %p70 = por %p68, %p69
      %p71 = scmp.ne.s32.totalorder %s60, %s63
      %p72 = scmp.eq.s32.totalorder %s29, 4
      %p73 = por %p71, %p72
      %p74 = scmp.ne.s32.totalorder %s63, %s64
      %p75 = scmp.eq.s32.totalorder %s29, 0
      %p76 = por %p74, %p75
      %p77 = scmp.ne.s32.totalorder %s63, %s64
      %p78 = scmp.eq.s32.totalorder %s30, 4
      %p79 = por %p77, %p78
      %p81 = scmp.ne.s32.totalorder %s64, %s80
      %p82 = scmp.eq.s32.totalorder %s30, 0
      %p83 = por %p81, %p82
      %s85 = sadd.s32 %s84, 1
      %p88 = scmp.eq.s32.totalorder %s24, 4
      %p89 = scmp.ne.s32.totalorder %s84, %s86
      %p90 = scmp.eq.s32.totalorder %s24, 0
      %p91 = por %p89, %p90
      %p92 = scmp.ne.s32.totalorder %s84, %s86
      %p93 = scmp.eq.s32.totalorder %s29, 4
      %p94 = por %p92, %p93
      %p95 = scmp.ne.s32.totalorder %s86, %s87
      %p96 = scmp.eq.s32.totalorder %s29, 0
      %p97 = por %p95, %p96
      %p98 = scmp.ne.s32.totalorder %s86, %s87
      %p99 = scmp.eq.s32.totalorder %s30, 4
      %p100 = por %p98, %p99
      %p102 = scmp.ne.s32.totalorder %s87, %s101
      %p103 = scmp.eq.s32.totalorder %s30, 0
      %p104 = por %p102, %p103
      %p105 = scmp.le.s32.totalorder 1, %s24
      %p106 = scmp.lt.s32.totalorder %s24, 6
      %p107 = pnand %p105, %p106
      %p108 = pneg %p107
      // Predicated region
      $region9: #{tpu_custom_call.1} parent=5 // pred_check
        _
      $region10: #{tpu_custom_call.1} parent=5 // pred_check_branch
        %110 = sbr.rel (%p107) target = $region12
      $region11: #{tpu_custom_call.1} parent=5 // pred_region
        %s111 = ssub.s32 %s24, 1
      $region12: #{tpu_custom_call.1} parent=5 // pred_fallthru
        _
      %p112 = scmp.lt.s32.totalorder %s24, 5
      // Predicated region
      $region13: #{tpu_custom_call.1} parent=5 // pred_check
        %p113 = pneg %p112
      $region14: #{tpu_custom_call.1} parent=5 // pred_check_branch
        %115 = sbr.rel (%p113) target = $region16
      $region15: #{tpu_custom_call.1} parent=5 // pred_region
        // Predicated region
        $region17: #{tpu_custom_call.1} parent=15 // pred_check
          %p116 = pneg %p44
        $region18: #{tpu_custom_call.1} parent=15 // pred_check_branch
          %118 = sbr.rel (%p116) target = $region20
        $region19: #{tpu_custom_call.1} parent=15 // pred_region
          %s119 = sand.u32 %s34, 1
          %s120 = scalar_lea.sflag [#allocation6], %s119
          %s121 = sand.u32 %s34, 1
          %s122 = smul.addr %s121, 512
          %s123 = scalar_lea.vmem [#allocation5], %s122
          %s124 = smul.u32 64, %s24
          %126 = vsyncadd %s120, 0
          %s127 = smul.addr %s124, 8
          %s128 = scalar_lea.hbm %s1, %s127
          %s129 = sshll.u32 %s128, 4
          %s130 = int_to_ptr.hbm [resolvable:$true] %s129
          %s131 = sshll.u32 %s123, 4
          %s132 = int_to_ptr.vmem [resolvable:$true] %s131
          %137 = dma.hbm_to_vmem [thread:$0]  %s130, 8192, %s132, %s120, 128, 128, 8
        $region20: #{tpu_custom_call.1} parent=15 // pred_fallthru
          _
        // Predicated region
        $region21: #{tpu_custom_call.1} parent=15 // pred_check
          %p138 = pneg %p70
        $region22: #{tpu_custom_call.1} parent=15 // pred_check_branch
          %140 = sbr.rel (%p138) target = $region24
        $region23: #{tpu_custom_call.1} parent=15 // pred_region
          %s141 = sand.u32 %s60, 1
          %s142 = scalar_lea.sflag [#allocation9], %s141
          %s143 = sand.u32 %s60, 1
          %s144 = smul.addr %s143, 512
          %s145 = scalar_lea.vmem [#allocation8], %s144
          %s146 = smul.u32 64, %s24
          %148 = vsyncadd %s142, 0
          %s149 = smul.addr %s146, 8
          %s150 = scalar_lea.hbm %s2, %s149
          %s151 = sshll.u32 %s150, 4
          %s152 = int_to_ptr.hbm [resolvable:$true] %s151
          %s153 = sshll.u32 %s145, 4
          %s154 = int_to_ptr.vmem [resolvable:$true] %s153
          %159 = dma.hbm_to_vmem [thread:$0]  %s152, 8192, %s154, %s142, 128, 128, 8
        $region24: #{tpu_custom_call.1} parent=15 // pred_fallthru
          _
      $region16: #{tpu_custom_call.1} parent=5 // pred_fallthru
        _
      %p160 = scmp.le.s32.totalorder 1, %s24
      %p161 = scmp.lt.s32.totalorder %s24, 6
      %p162 = pnand %p160, %p161
      %p163 = pneg %p162
      // Predicated region
      $region25: #{tpu_custom_call.1} parent=5 // pred_check
        _
      $region26: #{tpu_custom_call.1} parent=5 // pred_check_branch
        %165 = sbr.rel (%p162) target = $region28
      $region27: #{tpu_custom_call.1} parent=5 // pred_region
        %s166 = ssub.s32 %s24, 1
        %s167 = sand.u32 %s37, 1
        %s168 = scalar_lea.sflag [#allocation6], %s167
        %s169 = sand.u32 %s37, 1
        %s170 = smul.addr %s169, 512
        %s171 = scalar_lea.vmem [#allocation5], %s170
        // Predicated region
        $region29: #{tpu_custom_call.1} parent=27 // pred_check
          %p172 = pneg %p50
        $region30: #{tpu_custom_call.1} parent=27 // pred_check_branch
          %174 = sbr.rel (%p172) target = $region32
        $region31: #{tpu_custom_call.1} parent=27 // pred_region
          %176 = dma.done %s168, 8192
        $region32: #{tpu_custom_call.1} parent=27 // pred_fallthru
          _
        %s177 = sand.u32 %s63, 1
        %s178 = scalar_lea.sflag [#allocation9], %s177
        %s179 = sand.u32 %s63, 1
        %s180 = smul.addr %s179, 512
        %s181 = scalar_lea.vmem [#allocation8], %s180
        // Predicated region
        $region33: #{tpu_custom_call.1} parent=27 // pred_check
          %p182 = pneg %p76
        $region34: #{tpu_custom_call.1} parent=27 // pred_check_branch
          %184 = sbr.rel (%p182) target = $region36
        $region35: #{tpu_custom_call.1} parent=27 // pred_region
          %186 = dma.done %s178, 8192
        $region36: #{tpu_custom_call.1} parent=27 // pred_fallthru
          _
        %s187 = sand.u32 %s37, 1
        %s188 = scalar_lea.sflag [#allocation6], %s187
        %s189 = sand.u32 %s37, 1
        %s190 = smul.addr %s189, 512
        %s191 = scalar_lea.vmem [#allocation5], %s190
        %p192 = pneg %p50
        %p193 = pneg %p47
        %s194 = sand.u32 %s63, 1
        %s195 = scalar_lea.sflag [#allocation9], %s194
        %s196 = sand.u32 %s63, 1
        %s197 = smul.addr %s196, 512
        %s198 = scalar_lea.vmem [#allocation8], %s197
        %p199 = pneg %p76
        %p200 = pneg %p73
        %p201 = pneg %p97
        %p202 = pneg %p94
        %s203 = smul.u32 64, %s29
        %s204 = smul.u32 64, %s29
        %p205 = scmp.eq.s32.totalorder %s29, 0
        // Predicated region
        $region37: #{tpu_custom_call.1} parent=27 // pred_check
          %p206 = pneg %p205
        $region38: #{tpu_custom_call.1} parent=27 // pred_check_branch
          %208 = sbr.rel (%p206) target = $region40
        $region39: #{tpu_custom_call.1} parent=27 // pred_region
          %209 = vst [vmem:[#allocation2] sm:$0xff] 0.0
          %210 = vst [vmem:[#allocation2 + $0x8] sm:$0xff] 0.0
          %211 = vst [vmem:[#allocation2 + $0x10] sm:$0xff] 0.0
          %212 = vst [vmem:[#allocation2 + $0x18] sm:$0xff] 0.0
          %213 = vst [vmem:[#allocation2 + $0x20] sm:$0xff] 0.0
          %214 = vst [vmem:[#allocation2 + $0x28] sm:$0xff] 0.0
          %215 = vst [vmem:[#allocation2 + $0x30] sm:$0xff] 0.0
          %216 = vst [vmem:[#allocation2 + $0x38] sm:$0xff] 0.0
          %217 = vst [vmem:[#allocation2 + $0x40] sm:$0xff] 0.0
          %218 = vst [vmem:[#allocation2 + $0x48] sm:$0xff] 0.0
          %219 = vst [vmem:[#allocation2 + $0x50] sm:$0xff] 0.0
          %220 = vst [vmem:[#allocation2 + $0x58] sm:$0xff] 0.0
          %221 = vst [vmem:[#allocation2 + $0x60] sm:$0xff] 0.0
          %222 = vst [vmem:[#allocation2 + $0x68] sm:$0xff] 0.0
          %223 = vst [vmem:[#allocation2 + $0x70] sm:$0xff] 0.0
          %224 = vst [vmem:[#allocation2 + $0x78] sm:$0xff] 0.0
          %225 = vst [vmem:[#allocation2 + $0x80] sm:$0xff] 0.0
          %226 = vst [vmem:[#allocation2 + $0x88] sm:$0xff] 0.0
          %227 = vst [vmem:[#allocation2 + $0x90] sm:$0xff] 0.0
          %228 = vst [vmem:[#allocation2 + $0x98] sm:$0xff] 0.0
          %229 = vst [vmem:[#allocation2 + $0xa0] sm:$0xff] 0.0
          %230 = vst [vmem:[#allocation2 + $0xa8] sm:$0xff] 0.0
          %231 = vst [vmem:[#allocation2 + $0xb0] sm:$0xff] 0.0
          %232 = vst [vmem:[#allocation2 + $0xb8] sm:$0xff] 0.0
          %233 = vst [vmem:[#allocation2 + $0xc0] sm:$0xff] 0.0
          %234 = vst [vmem:[#allocation2 + $0xc8] sm:$0xff] 0.0
          %235 = vst [vmem:[#allocation2 + $0xd0] sm:$0xff] 0.0
          %236 = vst [vmem:[#allocation2 + $0xd8] sm:$0xff] 0.0
          %237 = vst [vmem:[#allocation2 + $0xe0] sm:$0xff] 0.0
          %238 = vst [vmem:[#allocation2 + $0xe8] sm:$0xff] 0.0
          %239 = vst [vmem:[#allocation2 + $0xf0] sm:$0xff] 0.0
          %240 = vst [vmem:[#allocation2 + $0xf8] sm:$0xff] 0.0
          %241 = vst [vmem:[#allocation2 + $0x100] sm:$0xff] 0.0
          %242 = vst [vmem:[#allocation2 + $0x108] sm:$0xff] 0.0
          %243 = vst [vmem:[#allocation2 + $0x110] sm:$0xff] 0.0
          %244 = vst [vmem:[#allocation2 + $0x118] sm:$0xff] 0.0
          %245 = vst [vmem:[#allocation2 + $0x120] sm:$0xff] 0.0
          %246 = vst [vmem:[#allocation2 + $0x128] sm:$0xff] 0.0
          %247 = vst [vmem:[#allocation2 + $0x130] sm:$0xff] 0.0
          %248 = vst [vmem:[#allocation2 + $0x138] sm:$0xff] 0.0
          %249 = vst [vmem:[#allocation2 + $0x140] sm:$0xff] 0.0
          %250 = vst [vmem:[#allocation2 + $0x148] sm:$0xff] 0.0
          %251 = vst [vmem:[#allocation2 + $0x150] sm:$0xff] 0.0
          %252 = vst [vmem:[#allocation2 + $0x158] sm:$0xff] 0.0
          %253 = vst [vmem:[#allocation2 + $0x160] sm:$0xff] 0.0
          %254 = vst [vmem:[#allocation2 + $0x168] sm:$0xff] 0.0
          %255 = vst [vmem:[#allocation2 + $0x170] sm:$0xff] 0.0
          %256 = vst [vmem:[#allocation2 + $0x178] sm:$0xff] 0.0
          %257 = vst [vmem:[#allocation2 + $0x180] sm:$0xff] 0.0
          %258 = vst [vmem:[#allocation2 + $0x188] sm:$0xff] 0.0
          %259 = vst [vmem:[#allocation2 + $0x190] sm:$0xff] 0.0
          %260 = vst [vmem:[#allocation2 + $0x198] sm:$0xff] 0.0
          %261 = vst [vmem:[#allocation2 + $0x1a0] sm:$0xff] 0.0
          %262 = vst [vmem:[#allocation2 + $0x1a8] sm:$0xff] 0.0
          %263 = vst [vmem:[#allocation2 + $0x1b0] sm:$0xff] 0.0
          %264 = vst [vmem:[#allocation2 + $0x1b8] sm:$0xff] 0.0
          %265 = vst [vmem:[#allocation2 + $0x1c0] sm:$0xff] 0.0
          %266 = vst [vmem:[#allocation2 + $0x1c8] sm:$0xff] 0.0
          %267 = vst [vmem:[#allocation2 + $0x1d0] sm:$0xff] 0.0
          %268 = vst [vmem:[#allocation2 + $0x1d8] sm:$0xff] 0.0
          %269 = vst [vmem:[#allocation2 + $0x1e0] sm:$0xff] 0.0
          %270 = vst [vmem:[#allocation2 + $0x1e8] sm:$0xff] 0.0
          %271 = vst [vmem:[#allocation2 + $0x1f0] sm:$0xff] 0.0
          %272 = vst [vmem:[#allocation2 + $0x1f8] sm:$0xff] 0.0
        $region40: #{tpu_custom_call.1} parent=27 // pred_fallthru
          _
        %v273 = vld [vmem:[%s171] sm:$0xff]
        %v274 = vld [vmem:[%s171 + $0x8] sm:$0xff]
        %v275 = vld [vmem:[%s171 + $0x10] sm:$0xff]
        %v276 = vld [vmem:[%s171 + $0x18] sm:$0xff]
        %v277 = vld [vmem:[%s171 + $0x20] sm:$0xff]
        %v278 = vld [vmem:[%s171 + $0x28] sm:$0xff]
        %v279 = vld [vmem:[%s171 + $0x30] sm:$0xff]
        %v280 = vld [vmem:[%s171 + $0x38] sm:$0xff]
        %v281 = vld [vmem:[%s171 + $0x40] sm:$0xff]
        %v282 = vld [vmem:[%s171 + $0x48] sm:$0xff]
        %v283 = vld [vmem:[%s171 + $0x50] sm:$0xff]
        %v284 = vld [vmem:[%s171 + $0x58] sm:$0xff]
        %v285 = vld [vmem:[%s171 + $0x60] sm:$0xff]
        %v286 = vld [vmem:[%s171 + $0x68] sm:$0xff]
        %v287 = vld [vmem:[%s171 + $0x70] sm:$0xff]
        %v288 = vld [vmem:[%s171 + $0x78] sm:$0xff]
        %v289 = vld [vmem:[%s171 + $0x80] sm:$0xff]
        %v290 = vld [vmem:[%s171 + $0x88] sm:$0xff]
        %v291 = vld [vmem:[%s171 + $0x90] sm:$0xff]
        %v292 = vld [vmem:[%s171 + $0x98] sm:$0xff]
        %v293 = vld [vmem:[%s171 + $0xa0] sm:$0xff]
        %v294 = vld [vmem:[%s171 + $0xa8] sm:$0xff]
        %v295 = vld [vmem:[%s171 + $0xb0] sm:$0xff]
        %v296 = vld [vmem:[%s171 + $0xb8] sm:$0xff]
        %v297 = vld [vmem:[%s171 + $0xc0] sm:$0xff]
        %v298 = vld [vmem:[%s171 + $0xc8] sm:$0xff]
        %v299 = vld [vmem:[%s171 + $0xd0] sm:$0xff]
        %v300 = vld [vmem:[%s171 + $0xd8] sm:$0xff]
        %v301 = vld [vmem:[%s171 + $0xe0] sm:$0xff]
        %v302 = vld [vmem:[%s171 + $0xe8] sm:$0xff]
        %v303 = vld [vmem:[%s171 + $0xf0] sm:$0xff]
        %v304 = vld [vmem:[%s171 + $0xf8] sm:$0xff]
        %v305 = vld [vmem:[%s171 + $0x100] sm:$0xff]
        %v306 = vld [vmem:[%s171 + $0x108] sm:$0xff]
        %v307 = vld [vmem:[%s171 + $0x110] sm:$0xff]
        %v308 = vld [vmem:[%s171 + $0x118] sm:$0xff]
        %v309 = vld [vmem:[%s171 + $0x120] sm:$0xff]
        %v310 = vld [vmem:[%s171 + $0x128] sm:$0xff]
        %v311 = vld [vmem:[%s171 + $0x130] sm:$0xff]
        %v312 = vld [vmem:[%s171 + $0x138] sm:$0xff]
        %v313 = vld [vmem:[%s171 + $0x140] sm:$0xff]
        %v314 = vld [vmem:[%s171 + $0x148] sm:$0xff]
        %v315 = vld [vmem:[%s171 + $0x150] sm:$0xff]
        %v316 = vld [vmem:[%s171 + $0x158] sm:$0xff]
        %v317 = vld [vmem:[%s171 + $0x160] sm:$0xff]
        %v318 = vld [vmem:[%s171 + $0x168] sm:$0xff]
        %v319 = vld [vmem:[%s171 + $0x170] sm:$0xff]
        %v320 = vld [vmem:[%s171 + $0x178] sm:$0xff]
        %v321 = vld [vmem:[%s171 + $0x180] sm:$0xff]
        %v322 = vld [vmem:[%s171 + $0x188] sm:$0xff]
        %v323 = vld [vmem:[%s171 + $0x190] sm:$0xff]
        %v324 = vld [vmem:[%s171 + $0x198] sm:$0xff]
        %v325 = vld [vmem:[%s171 + $0x1a0] sm:$0xff]
        %v326 = vld [vmem:[%s171 + $0x1a8] sm:$0xff]
        %v327 = vld [vmem:[%s171 + $0x1b0] sm:$0xff]
        %v328 = vld [vmem:[%s171 + $0x1b8] sm:$0xff]
        %v329 = vld [vmem:[%s171 + $0x1c0] sm:$0xff]
        %v330 = vld [vmem:[%s171 + $0x1c8] sm:$0xff]
        %v331 = vld [vmem:[%s171 + $0x1d0] sm:$0xff]
        %v332 = vld [vmem:[%s171 + $0x1d8] sm:$0xff]
        %v333 = vld [vmem:[%s171 + $0x1e0] sm:$0xff]
        %v334 = vld [vmem:[%s171 + $0x1e8] sm:$0xff]
        %v335 = vld [vmem:[%s171 + $0x1f0] sm:$0xff]
        %v336 = vld [vmem:[%s171 + $0x1f8] sm:$0xff]
        %v337 = vld [vmem:[%s181] sm:$0xff]
        %v338 = vld [vmem:[%s181 + $0x8] sm:$0xff]
        %v339 = vld [vmem:[%s181 + $0x10] sm:$0xff]
        %v340 = vld [vmem:[%s181 + $0x18] sm:$0xff]
        %v341 = vld [vmem:[%s181 + $0x20] sm:$0xff]
        %v342 = vld [vmem:[%s181 + $0x28] sm:$0xff]
        %v343 = vld [vmem:[%s181 + $0x30] sm:$0xff]
        %v344 = vld [vmem:[%s181 + $0x38] sm:$0xff]
        %v345 = vld [vmem:[%s181 + $0x40] sm:$0xff]
        %v346 = vld [vmem:[%s181 + $0x48] sm:$0xff]
        %v347 = vld [vmem:[%s181 + $0x50] sm:$0xff]
        %v348 = vld [vmem:[%s181 + $0x58] sm:$0xff]
        %v349 = vld [vmem:[%s181 + $0x60] sm:$0xff]
        %v350 = vld [vmem:[%s181 + $0x68] sm:$0xff]
        %v351 = vld [vmem:[%s181 + $0x70] sm:$0xff]
        %v352 = vld [vmem:[%s181 + $0x78] sm:$0xff]
        %v353 = vld [vmem:[%s181 + $0x80] sm:$0xff]
        %v354 = vld [vmem:[%s181 + $0x88] sm:$0xff]
        %v355 = vld [vmem:[%s181 + $0x90] sm:$0xff]
        %v356 = vld [vmem:[%s181 + $0x98] sm:$0xff]
        %v357 = vld [vmem:[%s181 + $0xa0] sm:$0xff]
        %v358 = vld [vmem:[%s181 + $0xa8] sm:$0xff]
        %v359 = vld [vmem:[%s181 + $0xb0] sm:$0xff]
        %v360 = vld [vmem:[%s181 + $0xb8] sm:$0xff]
        %v361 = vld [vmem:[%s181 + $0xc0] sm:$0xff]
        %v362 = vld [vmem:[%s181 + $0xc8] sm:$0xff]
        %v363 = vld [vmem:[%s181 + $0xd0] sm:$0xff]
        %v364 = vld [vmem:[%s181 + $0xd8] sm:$0xff]
        %v365 = vld [vmem:[%s181 + $0xe0] sm:$0xff]
        %v366 = vld [vmem:[%s181 + $0xe8] sm:$0xff]
        %v367 = vld [vmem:[%s181 + $0xf0] sm:$0xff]
        %v368 = vld [vmem:[%s181 + $0xf8] sm:$0xff]
        %v369 = vld [vmem:[%s181 + $0x100] sm:$0xff]
        %v370 = vld [vmem:[%s181 + $0x108] sm:$0xff]
        %v371 = vld [vmem:[%s181 + $0x110] sm:$0xff]
        %v372 = vld [vmem:[%s181 + $0x118] sm:$0xff]
        %v373 = vld [vmem:[%s181 + $0x120] sm:$0xff]
        %v374 = vld [vmem:[%s181 + $0x128] sm:$0xff]
        %v375 = vld [vmem:[%s181 + $0x130] sm:$0xff]
        %v376 = vld [vmem:[%s181 + $0x138] sm:$0xff]
        %v377 = vld [vmem:[%s181 + $0x140] sm:$0xff]
        %v378 = vld [vmem:[%s181 + $0x148] sm:$0xff]
        %v379 = vld [vmem:[%s181 + $0x150] sm:$0xff]
        %v380 = vld [vmem:[%s181 + $0x158] sm:$0xff]
        %v381 = vld [vmem:[%s181 + $0x160] sm:$0xff]
        %v382 = vld [vmem:[%s181 + $0x168] sm:$0xff]
        %v383 = vld [vmem:[%s181 + $0x170] sm:$0xff]
        %v384 = vld [vmem:[%s181 + $0x178] sm:$0xff]
        %v385 = vld [vmem:[%s181 + $0x180] sm:$0xff]
        %v386 = vld [vmem:[%s181 + $0x188] sm:$0xff]
        %v387 = vld [vmem:[%s181 + $0x190] sm:$0xff]
        %v388 = vld [vmem:[%s181 + $0x198] sm:$0xff]
        %v389 = vld [vmem:[%s181 + $0x1a0] sm:$0xff]
        %v390 = vld [vmem:[%s181 + $0x1a8] sm:$0xff]
        %v391 = vld [vmem:[%s181 + $0x1b0] sm:$0xff]
        %v392 = vld [vmem:[%s181 + $0x1b8] sm:$0xff]
        %v393 = vld [vmem:[%s181 + $0x1c0] sm:$0xff]
        %v394 = vld [vmem:[%s181 + $0x1c8] sm:$0xff]
        %v395 = vld [vmem:[%s181 + $0x1d0] sm:$0xff]
        %v396 = vld [vmem:[%s181 + $0x1d8] sm:$0xff]
        %v397 = vld [vmem:[%s181 + $0x1e0] sm:$0xff]
        %v398 = vld [vmem:[%s181 + $0x1e8] sm:$0xff]
        %v399 = vld [vmem:[%s181 + $0x1f0] sm:$0xff]
        %v400 = vld [vmem:[%s181 + $0x1f8] sm:$0xff]
        %v401 = vmax.f32 %v273, 0.0
        %v402 = vmax.f32 %v274, 0.0
        %v403 = vmax.f32 %v275, 0.0
        %v404 = vmax.f32 %v276, 0.0
        %v405 = vmax.f32 %v277, 0.0
        %v406 = vmax.f32 %v278, 0.0
        %v407 = vmax.f32 %v279, 0.0
        %v408 = vmax.f32 %v280, 0.0
        %v409 = vmax.f32 %v281, 0.0
        %v410 = vmax.f32 %v282, 0.0
        %v411 = vmax.f32 %v283, 0.0
        %v412 = vmax.f32 %v284, 0.0
        %v413 = vmax.f32 %v285, 0.0
        %v414 = vmax.f32 %v286, 0.0
        %v415 = vmax.f32 %v287, 0.0
        %v416 = vmax.f32 %v288, 0.0
        %v417 = vmax.f32 %v289, 0.0
        %v418 = vmax.f32 %v290, 0.0
        %v419 = vmax.f32 %v291, 0.0
        %v420 = vmax.f32 %v292, 0.0
        %v421 = vmax.f32 %v293, 0.0
        %v422 = vmax.f32 %v294, 0.0
        %v423 = vmax.f32 %v295, 0.0
        %v424 = vmax.f32 %v296, 0.0
        %v425 = vmax.f32 %v297, 0.0
        %v426 = vmax.f32 %v298, 0.0
        %v427 = vmax.f32 %v299, 0.0
        %v428 = vmax.f32 %v300, 0.0
        %v429 = vmax.f32 %v301, 0.0
        %v430 = vmax.f32 %v302, 0.0
        %v431 = vmax.f32 %v303, 0.0
        %v432 = vmax.f32 %v304, 0.0
        %v433 = vmax.f32 %v305, 0.0
        %v434 = vmax.f32 %v306, 0.0
        %v435 = vmax.f32 %v307, 0.0
        %v436 = vmax.f32 %v308, 0.0
        %v437 = vmax.f32 %v309, 0.0
        %v438 = vmax.f32 %v310, 0.0
        %v439 = vmax.f32 %v311, 0.0
        %v440 = vmax.f32 %v312, 0.0
        %v441 = vmax.f32 %v313, 0.0
        %v442 = vmax.f32 %v314, 0.0
        %v443 = vmax.f32 %v315, 0.0
        %v444 = vmax.f32 %v316, 0.0
        %v445 = vmax.f32 %v317, 0.0
        %v446 = vmax.f32 %v318, 0.0
        %v447 = vmax.f32 %v319, 0.0
        %v448 = vmax.f32 %v320, 0.0
        %v449 = vmax.f32 %v321, 0.0
        %v450 = vmax.f32 %v322, 0.0
        %v451 = vmax.f32 %v323, 0.0
        %v452 = vmax.f32 %v324, 0.0
        %v453 = vmax.f32 %v325, 0.0
        %v454 = vmax.f32 %v326, 0.0
        %v455 = vmax.f32 %v327, 0.0
        %v456 = vmax.f32 %v328, 0.0
        %v457 = vmax.f32 %v329, 0.0
        %v458 = vmax.f32 %v330, 0.0
        %v459 = vmax.f32 %v331, 0.0
        %v460 = vmax.f32 %v332, 0.0
        %v461 = vmax.f32 %v333, 0.0
        %v462 = vmax.f32 %v334, 0.0
        %v463 = vmax.f32 %v335, 0.0
        %v464 = vmax.f32 %v336, 0.0
        %v465 = vmul.f32 %v273, %v337
        %v466 = vmul.f32 %v274, %v338
        %v467 = vmul.f32 %v275, %v339
        %v468 = vmul.f32 %v276, %v340
        %v469 = vmul.f32 %v277, %v341
        %v470 = vmul.f32 %v278, %v342
        %v471 = vmul.f32 %v279, %v343
        %v472 = vmul.f32 %v280, %v344
        %v473 = vmul.f32 %v281, %v345
        %v474 = vmul.f32 %v282, %v346
        %v475 = vmul.f32 %v283, %v347
        %v476 = vmul.f32 %v284, %v348
        %v477 = vmul.f32 %v285, %v349
        %v478 = vmul.f32 %v286, %v350
        %v479 = vmul.f32 %v287, %v351
        %v480 = vmul.f32 %v288, %v352
        %v481 = vmul.f32 %v289, %v353
        %v482 = vmul.f32 %v290, %v354
        %v483 = vmul.f32 %v291, %v355
        %v484 = vmul.f32 %v292, %v356
        %v485 = vmul.f32 %v293, %v357
        %v486 = vmul.f32 %v294, %v358
        %v487 = vmul.f32 %v295, %v359
        %v488 = vmul.f32 %v296, %v360
        %v489 = vmul.f32 %v297, %v361
        %v490 = vmul.f32 %v298, %v362
        %v491 = vmul.f32 %v299, %v363
        %v492 = vmul.f32 %v300, %v364
        %v493 = vmul.f32 %v301, %v365
        %v494 = vmul.f32 %v302, %v366
        %v495 = vmul.f32 %v303, %v367
        %v496 = vmul.f32 %v304, %v368
        %v497 = vmul.f32 %v305, %v369
        %v498 = vmul.f32 %v306, %v370
        %v499 = vmul.f32 %v307, %v371
        %v500 = vmul.f32 %v308, %v372
        %v501 = vmul.f32 %v309, %v373
        %v502 = vmul.f32 %v310, %v374
        %v503 = vmul.f32 %v311, %v375
        %v504 = vmul.f32 %v312, %v376
        %v505 = vmul.f32 %v313, %v377
        %v506 = vmul.f32 %v314, %v378
        %v507 = vmul.f32 %v315, %v379
        %v508 = vmul.f32 %v316, %v380
        %v509 = vmul.f32 %v317, %v381
        %v510 = vmul.f32 %v318, %v382
        %v511 = vmul.f32 %v319, %v383
        %v512 = vmul.f32 %v320, %v384
        %v513 = vmul.f32 %v321, %v385
        %v514 = vmul.f32 %v322, %v386
        %v515 = vmul.f32 %v323, %v387
        %v516 = vmul.f32 %v324, %v388
        %v517 = vmul.f32 %v325, %v389
        %v518 = vmul.f32 %v326, %v390
        %v519 = vmul.f32 %v327, %v391
        %v520 = vmul.f32 %v328, %v392
        %v521 = vmul.f32 %v329, %v393
        %v522 = vmul.f32 %v330, %v394
        %v523 = vmul.f32 %v331, %v395
        %v524 = vmul.f32 %v332, %v396
        %v525 = vmul.f32 %v333, %v397
        %v526 = vmul.f32 %v334, %v398
        %v527 = vmul.f32 %v335, %v399
        %v528 = vmul.f32 %v336, %v400
        %v529 = vsub.f32 %v401, %v465
        %v530 = vsub.f32 %v402, %v466
        %v531 = vsub.f32 %v403, %v467
        %v532 = vsub.f32 %v404, %v468
        %v533 = vsub.f32 %v405, %v469
        %v534 = vsub.f32 %v406, %v470
        %v535 = vsub.f32 %v407, %v471
        %v536 = vsub.f32 %v408, %v472
        %v537 = vsub.f32 %v409, %v473
        %v538 = vsub.f32 %v410, %v474
        %v539 = vsub.f32 %v411, %v475
        %v540 = vsub.f32 %v412, %v476
        %v541 = vsub.f32 %v413, %v477
        %v542 = vsub.f32 %v414, %v478
        %v543 = vsub.f32 %v415, %v479
        %v544 = vsub.f32 %v416, %v480
        %v545 = vsub.f32 %v417, %v481
        %v546 = vsub.f32 %v418, %v482
        %v547 = vsub.f32 %v419, %v483
        %v548 = vsub.f32 %v420, %v484
        %v549 = vsub.f32 %v421, %v485
        %v550 = vsub.f32 %v422, %v486
        %v551 = vsub.f32 %v423, %v487
        %v552 = vsub.f32 %v424, %v488
        %v553 = vsub.f32 %v425, %v489
        %v554 = vsub.f32 %v426, %v490
        %v555 = vsub.f32 %v427, %v491
        %v556 = vsub.f32 %v428, %v492
        %v557 = vsub.f32 %v429, %v493
        %v558 = vsub.f32 %v430, %v494
        %v559 = vsub.f32 %v431, %v495
        %v560 = vsub.f32 %v432, %v496
        %v561 = vsub.f32 %v433, %v497
        %v562 = vsub.f32 %v434, %v498
        %v563 = vsub.f32 %v435, %v499
        %v564 = vsub.f32 %v436, %v500
        %v565 = vsub.f32 %v437, %v501
        %v566 = vsub.f32 %v438, %v502
        %v567 = vsub.f32 %v439, %v503
        %v568 = vsub.f32 %v440, %v504
        %v569 = vsub.f32 %v441, %v505
        %v570 = vsub.f32 %v442, %v506
        %v571 = vsub.f32 %v443, %v507
        %v572 = vsub.f32 %v444, %v508
        %v573 = vsub.f32 %v445, %v509
        %v574 = vsub.f32 %v446, %v510
        %v575 = vsub.f32 %v447, %v511
        %v576 = vsub.f32 %v448, %v512
        %v577 = vsub.f32 %v449, %v513
        %v578 = vsub.f32 %v450, %v514
        %v579 = vsub.f32 %v451, %v515
        %v580 = vsub.f32 %v452, %v516
        %v581 = vsub.f32 %v453, %v517
        %v582 = vsub.f32 %v454, %v518
        %v583 = vsub.f32 %v455, %v519
        %v584 = vsub.f32 %v456, %v520
        %v585 = vsub.f32 %v457, %v521
        %v586 = vsub.f32 %v458, %v522
        %v587 = vsub.f32 %v459, %v523
        %v588 = vsub.f32 %v460, %v524
        %v589 = vsub.f32 %v461, %v525
        %v590 = vsub.f32 %v462, %v526
        %v591 = vsub.f32 %v463, %v527
        %v592 = vsub.f32 %v464, %v528
        %v593 = vand.u32 2147483647, %v273
        %v594 = vand.u32 2147483647, %v274
        %v595 = vand.u32 2147483647, %v275
        %v596 = vand.u32 2147483647, %v276
        %v597 = vand.u32 2147483647, %v277
        %v598 = vand.u32 2147483647, %v278
        %v599 = vand.u32 2147483647, %v279
        %v600 = vand.u32 2147483647, %v280
        %v601 = vand.u32 2147483647, %v281
        %v602 = vand.u32 2147483647, %v282
        %v603 = vand.u32 2147483647, %v283
        %v604 = vand.u32 2147483647, %v284
        %v605 = vand.u32 2147483647, %v285
        %v606 = vand.u32 2147483647, %v286
        %v607 = vand.u32 2147483647, %v287
        %v608 = vand.u32 2147483647, %v288
        %v609 = vand.u32 2147483647, %v289
        %v610 = vand.u32 2147483647, %v290
        %v611 = vand.u32 2147483647, %v291
        %v612 = vand.u32 2147483647, %v292
        %v613 = vand.u32 2147483647, %v293
        %v614 = vand.u32 2147483647, %v294
        %v615 = vand.u32 2147483647, %v295
        %v616 = vand.u32 2147483647, %v296
        %v617 = vand.u32 2147483647, %v297
        %v618 = vand.u32 2147483647, %v298
        %v619 = vand.u32 2147483647, %v299
        %v620 = vand.u32 2147483647, %v300
        %v621 = vand.u32 2147483647, %v301
        %v622 = vand.u32 2147483647, %v302
        %v623 = vand.u32 2147483647, %v303
        %v624 = vand.u32 2147483647, %v304
        %v625 = vand.u32 2147483647, %v305
        %v626 = vand.u32 2147483647, %v306
        %v627 = vand.u32 2147483647, %v307
        %v628 = vand.u32 2147483647, %v308
        %v629 = vand.u32 2147483647, %v309
        %v630 = vand.u32 2147483647, %v310
        %v631 = vand.u32 2147483647, %v311
        %v632 = vand.u32 2147483647, %v312
        %v633 = vand.u32 2147483647, %v313
        %v634 = vand.u32 2147483647, %v314
        %v635 = vand.u32 2147483647, %v315
        %v636 = vand.u32 2147483647, %v316
        %v637 = vand.u32 2147483647, %v317
        %v638 = vand.u32 2147483647, %v318
        %v639 = vand.u32 2147483647, %v319
        %v640 = vand.u32 2147483647, %v320
        %v641 = vand.u32 2147483647, %v321
        %v642 = vand.u32 2147483647, %v322
        %v643 = vand.u32 2147483647, %v323
        %v644 = vand.u32 2147483647, %v324
        %v645 = vand.u32 2147483647, %v325
        %v646 = vand.u32 2147483647, %v326
        %v647 = vand.u32 2147483647, %v327
        %v648 = vand.u32 2147483647, %v328
        %v649 = vand.u32 2147483647, %v329
        %v650 = vand.u32 2147483647, %v330
        %v651 = vand.u32 2147483647, %v331
        %v652 = vand.u32 2147483647, %v332
        %v653 = vand.u32 2147483647, %v333
        %v654 = vand.u32 2147483647, %v334
        %v655 = vand.u32 2147483647, %v335
        %v656 = vand.u32 2147483647, %v336
        %v657 = vsub.f32 0.0, %v593
        %v658 = vsub.f32 0.0, %v594
        %v659 = vsub.f32 0.0, %v595
        %v660 = vsub.f32 0.0, %v596
        %v661 = vsub.f32 0.0, %v597
        %v662 = vsub.f32 0.0, %v598
        %v663 = vsub.f32 0.0, %v599
        %v664 = vsub.f32 0.0, %v600
        %v665 = vsub.f32 0.0, %v601
        %v666 = vsub.f32 0.0, %v602
        %v667 = vsub.f32 0.0, %v603
        %v668 = vsub.f32 0.0, %v604
        %v669 = vsub.f32 0.0, %v605
        %v670 = vsub.f32 0.0, %v606
        %v671 = vsub.f32 0.0, %v607
        %v672 = vsub.f32 0.0, %v608
        %v673 = vsub.f32 0.0, %v609
        %v674 = vsub.f32 0.0, %v610
        %v675 = vsub.f32 0.0, %v611
        %v676 = vsub.f32 0.0, %v612
        %v677 = vsub.f32 0.0, %v613
        %v678 = vsub.f32 0.0, %v614
        %v679 = vsub.f32 0.0, %v615
        %v680 = vsub.f32 0.0, %v616
        %v681 = vsub.f32 0.0, %v617
        %v682 = vsub.f32 0.0, %v618
        %v683 = vsub.f32 0.0, %v619
        %v684 = vsub.f32 0.0, %v620
        %v685 = vsub.f32 0.0, %v621
        %v686 = vsub.f32 0.0, %v622
        %v687 = vsub.f32 0.0, %v623
        %v688 = vsub.f32 0.0, %v624
        %v689 = vsub.f32 0.0, %v625
        %v690 = vsub.f32 0.0, %v626
        %v691 = vsub.f32 0.0, %v627
        %v692 = vsub.f32 0.0, %v628
        %v693 = vsub.f32 0.0, %v629
        %v694 = vsub.f32 0.0, %v630
        %v695 = vsub.f32 0.0, %v631
        %v696 = vsub.f32 0.0, %v632
        %v697 = vsub.f32 0.0, %v633
        %v698 = vsub.f32 0.0, %v634
        %v699 = vsub.f32 0.0, %v635
        %v700 = vsub.f32 0.0, %v636
        %v701 = vsub.f32 0.0, %v637
        %v702 = vsub.f32 0.0, %v638
        %v703 = vsub.f32 0.0, %v639
        %v704 = vsub.f32 0.0, %v640
        %v705 = vsub.f32 0.0, %v641
        %v706 = vsub.f32 0.0, %v642
        %v707 = vsub.f32 0.0, %v643
        %v708 = vsub.f32 0.0, %v644
        %v709 = vsub.f32 0.0, %v645
        %v710 = vsub.f32 0.0, %v646
        %v711 = vsub.f32 0.0, %v647
        %v712 = vsub.f32 0.0, %v648
        %v713 = vsub.f32 0.0, %v649
        %v714 = vsub.f32 0.0, %v650
        %v715 = vsub.f32 0.0, %v651
        %v716 = vsub.f32 0.0, %v652
        %v717 = vsub.f32 0.0, %v653
        %v718 = vsub.f32 0.0, %v654
        %v719 = vsub.f32 0.0, %v655
        %v720 = vsub.f32 0.0, %v656
        %v721 = vmul.f32 %v657, 1.442695
        %v722 = vpow.pop %v721
        %v723 = vmul.f32 %v658, 1.442695
        %v724 = vpow.pop %v723
        %v725 = vmul.f32 %v659, 1.442695
        %v726 = vpow.pop %v725
        %v727 = vmul.f32 %v660, 1.442695
        %v728 = vpow.pop %v727
        %v729 = vmul.f32 %v661, 1.442695
        %v730 = vpow.pop %v729
        %v731 = vmul.f32 %v662, 1.442695
        %v732 = vpow.pop %v731
        %v733 = vmul.f32 %v663, 1.442695
        %v734 = vpow.pop %v733
        %v735 = vmul.f32 %v664, 1.442695
        %v736 = vpow.pop %v735
        %v737 = vmul.f32 %v665, 1.442695
        %v738 = vpow.pop %v737
        %v739 = vmul.f32 %v666, 1.442695
        %v740 = vpow.pop %v739
        %v741 = vmul.f32 %v667, 1.442695
        %v742 = vpow.pop %v741
        %v743 = vmul.f32 %v668, 1.442695
        %v744 = vpow.pop %v743
        %v745 = vmul.f32 %v669, 1.442695
        %v746 = vpow.pop %v745
        %v747 = vmul.f32 %v670, 1.442695
        %v748 = vpow.pop %v747
        %v749 = vmul.f32 %v671, 1.442695
        %v750 = vpow.pop %v749
        %v751 = vmul.f32 %v672, 1.442695
        %v752 = vpow.pop %v751
        %v753 = vmul.f32 %v673, 1.442695
        %v754 = vpow.pop %v753
        %v755 = vmul.f32 %v674, 1.442695
        %v756 = vpow.pop %v755
        %v757 = vmul.f32 %v675, 1.442695
        %v758 = vpow.pop %v757
        %v759 = vmul.f32 %v676, 1.442695
        %v760 = vpow.pop %v759
        %v761 = vmul.f32 %v677, 1.442695
        %v762 = vpow.pop %v761
        %v763 = vmul.f32 %v678, 1.442695
        %v764 = vpow.pop %v763
        %v765 = vmul.f32 %v679, 1.442695
        %v766 = vpow.pop %v765
        %v767 = vmul.f32 %v680, 1.442695
        %v768 = vpow.pop %v767
        %v769 = vmul.f32 %v681, 1.442695
        %v770 = vpow.pop %v769
        %v771 = vmul.f32 %v682, 1.442695
        %v772 = vpow.pop %v771
        %v773 = vmul.f32 %v683, 1.442695
        %v774 = vpow.pop %v773
        %v775 = vmul.f32 %v684, 1.442695
        %v776 = vpow.pop %v775
        %v777 = vmul.f32 %v685, 1.442695
        %v778 = vpow.pop %v777
        %v779 = vmul.f32 %v686, 1.442695
        %v780 = vpow.pop %v779
        %v781 = vmul.f32 %v687, 1.442695
        %v782 = vpow.pop %v781
        %v783 = vmul.f32 %v688, 1.442695
        %v784 = vpow.pop %v783
        %v785 = vmul.f32 %v689, 1.442695
        %v786 = vpow.pop %v785
        %v787 = vmul.f32 %v690, 1.442695
        %v788 = vpow.pop %v787
        %v789 = vmul.f32 %v691, 1.442695
        %v790 = vpow.pop %v789
        %v791 = vmul.f32 %v692, 1.442695
        %v792 = vpow.pop %v791
        %v793 = vmul.f32 %v693, 1.442695
        %v794 = vpow.pop %v793
        %v795 = vmul.f32 %v694, 1.442695
        %v796 = vpow.pop %v795
        %v797 = vmul.f32 %v695, 1.442695
        %v798 = vpow.pop %v797
        %v799 = vmul.f32 %v696, 1.442695
        %v800 = vpow.pop %v799
        %v801 = vmul.f32 %v697, 1.442695
        %v802 = vpow.pop %v801
        %v803 = vmul.f32 %v698, 1.442695
        %v804 = vpow.pop %v803
        %v805 = vmul.f32 %v699, 1.442695
        %v806 = vpow.pop %v805
        %v807 = vmul.f32 %v700, 1.442695
        %v808 = vpow.pop %v807
        %v809 = vmul.f32 %v701, 1.442695
        %v810 = vpow.pop %v809
        %v811 = vmul.f32 %v702, 1.442695
        %v812 = vpow.pop %v811
        %v813 = vmul.f32 %v703, 1.442695
        %v814 = vpow.pop %v813
        %v815 = vmul.f32 %v704, 1.442695
        %v816 = vpow.pop %v815
        %v817 = vmul.f32 %v705, 1.442695
        %v818 = vpow.pop %v817
        %v819 = vmul.f32 %v706, 1.442695
        %v820 = vpow.pop %v819
        %v821 = vmul.f32 %v707, 1.442695
        %v822 = vpow.pop %v821
        %v823 = vmul.f32 %v708, 1.442695
        %v824 = vpow.pop %v823
        %v825 = vmul.f32 %v709, 1.442695
        %v826 = vpow.pop %v825
        %v827 = vmul.f32 %v710, 1.442695
        %v828 = vpow.pop %v827
        %v829 = vmul.f32 %v711, 1.442695
        %v830 = vpow.pop %v829
        %v831 = vmul.f32 %v712, 1.442695
        %v832 = vpow.pop %v831
        %v833 = vmul.f32 %v713, 1.442695
        %v834 = vpow.pop %v833
        %v835 = vmul.f32 %v714, 1.442695
        %v836 = vpow.pop %v835
        %v837 = vmul.f32 %v715, 1.442695
        %v838 = vpow.pop %v837
        %v839 = vmul.f32 %v716, 1.442695
        %v840 = vpow.pop %v839
        %v841 = vmul.f32 %v717, 1.442695
        %v842 = vpow.pop %v841
        %v843 = vmul.f32 %v718, 1.442695
        %v844 = vpow.pop %v843
        %v845 = vmul.f32 %v719, 1.442695
        %v846 = vpow.pop %v845
        %v847 = vmul.f32 %v720, 1.442695
        %v848 = vpow.pop %v847
        %v849 = vadd.f32 %v722, 1.0
        %v850 = vlog2.pop %v849
        %v851 = vmul.f32 %v850, 0.6931472
        %v852 = vmul.f32 -0.5, %v722
        %v853 = vadd.f32 %v852, 1.0
        %v854 = vmul.f32 %v853, %v722
        %v855 = vand.u32 2147483647, %v722
        %vm856 = vcmp.lt.f32.partialorder %v855, 0.0004427343
        %v857 = vsel %vm856, %v854, %v851
        %v858 = vadd.f32 %v724, 1.0
        %v859 = vlog2.pop %v858
        %v860 = vmul.f32 %v859, 0.6931472
        %v861 = vmul.f32 -0.5, %v724
        %v862 = vadd.f32 %v861, 1.0
        %v863 = vmul.f32 %v862, %v724
        %v864 = vand.u32 2147483647, %v724
        %vm865 = vcmp.lt.f32.partialorder %v864, 0.0004427343
        %v866 = vsel %vm865, %v863, %v860
        %v867 = vadd.f32 %v726, 1.0
        %v868 = vlog2.pop %v867
        %v869 = vmul.f32 %v868, 0.6931472
        %v870 = vmul.f32 -0.5, %v726
        %v871 = vadd.f32 %v870, 1.0
        %v872 = vmul.f32 %v871, %v726
        %v873 = vand.u32 2147483647, %v726
        %vm874 = vcmp.lt.f32.partialorder %v873, 0.0004427343
        %v875 = vsel %vm874, %v872, %v869
        %v876 = vadd.f32 %v728, 1.0
        %v877 = vlog2.pop %v876
        %v878 = vmul.f32 %v877, 0.6931472
        %v879 = vmul.f32 -0.5, %v728
        %v880 = vadd.f32 %v879, 1.0
        %v881 = vmul.f32 %v880, %v728
        %v882 = vand.u32 2147483647, %v728
        %vm883 = vcmp.lt.f32.partialorder %v882, 0.0004427343
        %v884 = vsel %vm883, %v881, %v878
        %v885 = vadd.f32 %v730, 1.0
        %v886 = vlog2.pop %v885
        %v887 = vmul.f32 %v886, 0.6931472
        %v888 = vmul.f32 -0.5, %v730
        %v889 = vadd.f32 %v888, 1.0
        %v890 = vmul.f32 %v889, %v730
        %v891 = vand.u32 2147483647, %v730
        %vm892 = vcmp.lt.f32.partialorder %v891, 0.0004427343
        %v893 = vsel %vm892, %v890, %v887
        %v894 = vadd.f32 %v732, 1.0
        %v895 = vlog2.pop %v894
        %v896 = vmul.f32 %v895, 0.6931472
        %v897 = vmul.f32 -0.5, %v732
        %v898 = vadd.f32 %v897, 1.0
        %v899 = vmul.f32 %v898, %v732
        %v900 = vand.u32 2147483647, %v732
        %vm901 = vcmp.lt.f32.partialorder %v900, 0.0004427343
        %v902 = vsel %vm901, %v899, %v896
        %v903 = vadd.f32 %v734, 1.0
        %v904 = vlog2.pop %v903
        %v905 = vmul.f32 %v904, 0.6931472
        %v906 = vmul.f32 -0.5, %v734
        %v907 = vadd.f32 %v906, 1.0
        %v908 = vmul.f32 %v907, %v734
        %v909 = vand.u32 2147483647, %v734
        %vm910 = vcmp.lt.f32.partialorder %v909, 0.0004427343
        %v911 = vsel %vm910, %v908, %v905
        %v912 = vadd.f32 %v736, 1.0
        %v913 = vlog2.pop %v912
        %v914 = vmul.f32 %v913, 0.6931472
        %v915 = vmul.f32 -0.5, %v736
        %v916 = vadd.f32 %v915, 1.0
        %v917 = vmul.f32 %v916, %v736
        %v918 = vand.u32 2147483647, %v736
        %vm919 = vcmp.lt.f32.partialorder %v918, 0.0004427343
        %v920 = vsel %vm919, %v917, %v914
        %v921 = vadd.f32 %v738, 1.0
        %v922 = vlog2.pop %v921
        %v923 = vmul.f32 %v922, 0.6931472
        %v924 = vmul.f32 -0.5, %v738
        %v925 = vadd.f32 %v924, 1.0
        %v926 = vmul.f32 %v925, %v738
        %v927 = vand.u32 2147483647, %v738
        %vm928 = vcmp.lt.f32.partialorder %v927, 0.0004427343
        %v929 = vsel %vm928, %v926, %v923
        %v930 = vadd.f32 %v740, 1.0
        %v931 = vlog2.pop %v930
        %v932 = vmul.f32 %v931, 0.6931472
        %v933 = vmul.f32 -0.5, %v740
        %v934 = vadd.f32 %v933, 1.0
        %v935 = vmul.f32 %v934, %v740
        %v936 = vand.u32 2147483647, %v740
        %vm937 = vcmp.lt.f32.partialorder %v936, 0.0004427343
        %v938 = vsel %vm937, %v935, %v932
        %v939 = vadd.f32 %v742, 1.0
        %v940 = vlog2.pop %v939
        %v941 = vmul.f32 %v940, 0.6931472
        %v942 = vmul.f32 -0.5, %v742
        %v943 = vadd.f32 %v942, 1.0
        %v944 = vmul.f32 %v943, %v742
        %v945 = vand.u32 2147483647, %v742
        %vm946 = vcmp.lt.f32.partialorder %v945, 0.0004427343
        %v947 = vsel %vm946, %v944, %v941
        %v948 = vadd.f32 %v744, 1.0
        %v949 = vlog2.pop %v948
        %v950 = vmul.f32 %v949, 0.6931472
        %v951 = vmul.f32 -0.5, %v744
        %v952 = vadd.f32 %v951, 1.0
        %v953 = vmul.f32 %v952, %v744
        %v954 = vand.u32 2147483647, %v744
        %vm955 = vcmp.lt.f32.partialorder %v954, 0.0004427343
        %v956 = vsel %vm955, %v953, %v950
        %v957 = vadd.f32 %v746, 1.0
        %v958 = vlog2.pop %v957
        %v959 = vmul.f32 %v958, 0.6931472
        %v960 = vmul.f32 -0.5, %v746
        %v961 = vadd.f32 %v960, 1.0
        %v962 = vmul.f32 %v961, %v746
        %v963 = vand.u32 2147483647, %v746
        %vm964 = vcmp.lt.f32.partialorder %v963, 0.0004427343
        %v965 = vsel %vm964, %v962, %v959
        %v966 = vadd.f32 %v748, 1.0
        %v967 = vlog2.pop %v966
        %v968 = vmul.f32 %v967, 0.6931472
        %v969 = vmul.f32 -0.5, %v748
        %v970 = vadd.f32 %v969, 1.0
        %v971 = vmul.f32 %v970, %v748
        %v972 = vand.u32 2147483647, %v748
        %vm973 = vcmp.lt.f32.partialorder %v972, 0.0004427343
        %v974 = vsel %vm973, %v971, %v968
        %v975 = vadd.f32 %v750, 1.0
        %v976 = vlog2.pop %v975
        %v977 = vmul.f32 %v976, 0.6931472
        %v978 = vmul.f32 -0.5, %v750
        %v979 = vadd.f32 %v978, 1.0
        %v980 = vmul.f32 %v979, %v750
        %v981 = vand.u32 2147483647, %v750
        %vm982 = vcmp.lt.f32.partialorder %v981, 0.0004427343
        %v983 = vsel %vm982, %v980, %v977
        %v984 = vadd.f32 %v752, 1.0
        %v985 = vlog2.pop %v984
        %v986 = vmul.f32 %v985, 0.6931472
        %v987 = vmul.f32 -0.5, %v752
        %v988 = vadd.f32 %v987, 1.0
        %v989 = vmul.f32 %v988, %v752
        %v990 = vand.u32 2147483647, %v752
        %vm991 = vcmp.lt.f32.partialorder %v990, 0.0004427343
        %v992 = vsel %vm991, %v989, %v986
        %v993 = vadd.f32 %v754, 1.0
        %v994 = vlog2.pop %v993
        %v995 = vmul.f32 %v994, 0.6931472
        %v996 = vmul.f32 -0.5, %v754
        %v997 = vadd.f32 %v996, 1.0
        %v998 = vmul.f32 %v997, %v754
        %v999 = vand.u32 2147483647, %v754
        %vm1000 = vcmp.lt.f32.partialorder %v999, 0.0004427343
        %v1001 = vsel %vm1000, %v998, %v995
        %v1002 = vadd.f32 %v756, 1.0
        %v1003 = vlog2.pop %v1002
        %v1004 = vmul.f32 %v1003, 0.6931472
        %v1005 = vmul.f32 -0.5, %v756
        %v1006 = vadd.f32 %v1005, 1.0
        %v1007 = vmul.f32 %v1006, %v756
        %v1008 = vand.u32 2147483647, %v756
        %vm1009 = vcmp.lt.f32.partialorder %v1008, 0.0004427343
        %v1010 = vsel %vm1009, %v1007, %v1004
        %v1011 = vadd.f32 %v758, 1.0
        %v1012 = vlog2.pop %v1011
        %v1013 = vmul.f32 %v1012, 0.6931472
        %v1014 = vmul.f32 -0.5, %v758
        %v1015 = vadd.f32 %v1014, 1.0
        %v1016 = vmul.f32 %v1015, %v758
        %v1017 = vand.u32 2147483647, %v758
        %vm1018 = vcmp.lt.f32.partialorder %v1017, 0.0004427343
        %v1019 = vsel %vm1018, %v1016, %v1013
        %v1020 = vadd.f32 %v760, 1.0
        %v1021 = vlog2.pop %v1020
        %v1022 = vmul.f32 %v1021, 0.6931472
        %v1023 = vmul.f32 -0.5, %v760
        %v1024 = vadd.f32 %v1023, 1.0
        %v1025 = vmul.f32 %v1024, %v760
        %v1026 = vand.u32 2147483647, %v760
        %vm1027 = vcmp.lt.f32.partialorder %v1026, 0.0004427343
        %v1028 = vsel %vm1027, %v1025, %v1022
        %v1029 = vadd.f32 %v762, 1.0
        %v1030 = vlog2.pop %v1029
        %v1031 = vmul.f32 %v1030, 0.6931472
        %v1032 = vmul.f32 -0.5, %v762
        %v1033 = vadd.f32 %v1032, 1.0
        %v1034 = vmul.f32 %v1033, %v762
        %v1035 = vand.u32 2147483647, %v762
        %vm1036 = vcmp.lt.f32.partialorder %v1035, 0.0004427343
        %v1037 = vsel %vm1036, %v1034, %v1031
        %v1038 = vadd.f32 %v764, 1.0
        %v1039 = vlog2.pop %v1038
        %v1040 = vmul.f32 %v1039, 0.6931472
        %v1041 = vmul.f32 -0.5, %v764
        %v1042 = vadd.f32 %v1041, 1.0
        %v1043 = vmul.f32 %v1042, %v764
        %v1044 = vand.u32 2147483647, %v764
        %vm1045 = vcmp.lt.f32.partialorder %v1044, 0.0004427343
        %v1046 = vsel %vm1045, %v1043, %v1040
        %v1047 = vadd.f32 %v766, 1.0
        %v1048 = vlog2.pop %v1047
        %v1049 = vmul.f32 %v1048, 0.6931472
        %v1050 = vmul.f32 -0.5, %v766
        %v1051 = vadd.f32 %v1050, 1.0
        %v1052 = vmul.f32 %v1051, %v766
        %v1053 = vand.u32 2147483647, %v766
        %vm1054 = vcmp.lt.f32.partialorder %v1053, 0.0004427343
        %v1055 = vsel %vm1054, %v1052, %v1049
        %v1056 = vadd.f32 %v768, 1.0
        %v1057 = vlog2.pop %v1056
        %v1058 = vmul.f32 %v1057, 0.6931472
        %v1059 = vmul.f32 -0.5, %v768
        %v1060 = vadd.f32 %v1059, 1.0
        %v1061 = vmul.f32 %v1060, %v768
        %v1062 = vand.u32 2147483647, %v768
        %vm1063 = vcmp.lt.f32.partialorder %v1062, 0.0004427343
        %v1064 = vsel %vm1063, %v1061, %v1058
        %v1065 = vadd.f32 %v770, 1.0
        %v1066 = vlog2.pop %v1065
        %v1067 = vmul.f32 %v1066, 0.6931472
        %v1068 = vmul.f32 -0.5, %v770
        %v1069 = vadd.f32 %v1068, 1.0
        %v1070 = vmul.f32 %v1069, %v770
        %v1071 = vand.u32 2147483647, %v770
        %vm1072 = vcmp.lt.f32.partialorder %v1071, 0.0004427343
        %v1073 = vsel %vm1072, %v1070, %v1067
        %v1074 = vadd.f32 %v772, 1.0
        %v1075 = vlog2.pop %v1074
        %v1076 = vmul.f32 %v1075, 0.6931472
        %v1077 = vmul.f32 -0.5, %v772
        %v1078 = vadd.f32 %v1077, 1.0
        %v1079 = vmul.f32 %v1078, %v772
        %v1080 = vand.u32 2147483647, %v772
        %vm1081 = vcmp.lt.f32.partialorder %v1080, 0.0004427343
        %v1082 = vsel %vm1081, %v1079, %v1076
        %v1083 = vadd.f32 %v774, 1.0
        %v1084 = vlog2.pop %v1083
        %v1085 = vmul.f32 %v1084, 0.6931472
        %v1086 = vmul.f32 -0.5, %v774
        %v1087 = vadd.f32 %v1086, 1.0
        %v1088 = vmul.f32 %v1087, %v774
        %v1089 = vand.u32 2147483647, %v774
        %vm1090 = vcmp.lt.f32.partialorder %v1089, 0.0004427343
        %v1091 = vsel %vm1090, %v1088, %v1085
        %v1092 = vadd.f32 %v776, 1.0
        %v1093 = vlog2.pop %v1092
        %v1094 = vmul.f32 %v1093, 0.6931472
        %v1095 = vmul.f32 -0.5, %v776
        %v1096 = vadd.f32 %v1095, 1.0
        %v1097 = vmul.f32 %v1096, %v776
        %v1098 = vand.u32 2147483647, %v776
        %vm1099 = vcmp.lt.f32.partialorder %v1098, 0.0004427343
        %v1100 = vsel %vm1099, %v1097, %v1094
        %v1101 = vadd.f32 %v778, 1.0
        %v1102 = vlog2.pop %v1101
        %v1103 = vmul.f32 %v1102, 0.6931472
        %v1104 = vmul.f32 -0.5, %v778
        %v1105 = vadd.f32 %v1104, 1.0
        %v1106 = vmul.f32 %v1105, %v778
        %v1107 = vand.u32 2147483647, %v778
        %vm1108 = vcmp.lt.f32.partialorder %v1107, 0.0004427343
        %v1109 = vsel %vm1108, %v1106, %v1103
        %v1110 = vadd.f32 %v780, 1.0
        %v1111 = vlog2.pop %v1110
        %v1112 = vmul.f32 %v1111, 0.6931472
        %v1113 = vmul.f32 -0.5, %v780
        %v1114 = vadd.f32 %v1113, 1.0
        %v1115 = vmul.f32 %v1114, %v780
        %v1116 = vand.u32 2147483647, %v780
        %vm1117 = vcmp.lt.f32.partialorder %v1116, 0.0004427343
        %v1118 = vsel %vm1117, %v1115, %v1112
        %v1119 = vadd.f32 %v782, 1.0
        %v1120 = vlog2.pop %v1119
        %v1121 = vmul.f32 %v1120, 0.6931472
        %v1122 = vmul.f32 -0.5, %v782
        %v1123 = vadd.f32 %v1122, 1.0
        %v1124 = vmul.f32 %v1123, %v782
        %v1125 = vand.u32 2147483647, %v782
        %vm1126 = vcmp.lt.f32.partialorder %v1125, 0.0004427343
        %v1127 = vsel %vm1126, %v1124, %v1121
        %v1128 = vadd.f32 %v784, 1.0
        %v1129 = vlog2.pop %v1128
        %v1130 = vmul.f32 %v1129, 0.6931472
        %v1131 = vmul.f32 -0.5, %v784
        %v1132 = vadd.f32 %v1131, 1.0
        %v1133 = vmul.f32 %v1132, %v784
        %v1134 = vand.u32 2147483647, %v784
        %vm1135 = vcmp.lt.f32.partialorder %v1134, 0.0004427343
        %v1136 = vsel %vm1135, %v1133, %v1130
        %v1137 = vadd.f32 %v786, 1.0
        %v1138 = vlog2.pop %v1137
        %v1139 = vmul.f32 %v1138, 0.6931472
        %v1140 = vmul.f32 -0.5, %v786
        %v1141 = vadd.f32 %v1140, 1.0
        %v1142 = vmul.f32 %v1141, %v786
        %v1143 = vand.u32 2147483647, %v786
        %vm1144 = vcmp.lt.f32.partialorder %v1143, 0.0004427343
        %v1145 = vsel %vm1144, %v1142, %v1139
        %v1146 = vadd.f32 %v788, 1.0
        %v1147 = vlog2.pop %v1146
        %v1148 = vmul.f32 %v1147, 0.6931472
        %v1149 = vmul.f32 -0.5, %v788
        %v1150 = vadd.f32 %v1149, 1.0
        %v1151 = vmul.f32 %v1150, %v788
        %v1152 = vand.u32 2147483647, %v788
        %vm1153 = vcmp.lt.f32.partialorder %v1152, 0.0004427343
        %v1154 = vsel %vm1153, %v1151, %v1148
        %v1155 = vadd.f32 %v790, 1.0
        %v1156 = vlog2.pop %v1155
        %v1157 = vmul.f32 %v1156, 0.6931472
        %v1158 = vmul.f32 -0.5, %v790
        %v1159 = vadd.f32 %v1158, 1.0
        %v1160 = vmul.f32 %v1159, %v790
        %v1161 = vand.u32 2147483647, %v790
        %vm1162 = vcmp.lt.f32.partialorder %v1161, 0.0004427343
        %v1163 = vsel %vm1162, %v1160, %v1157
        %v1164 = vadd.f32 %v792, 1.0
        %v1165 = vlog2.pop %v1164
        %v1166 = vmul.f32 %v1165, 0.6931472
        %v1167 = vmul.f32 -0.5, %v792
        %v1168 = vadd.f32 %v1167, 1.0
        %v1169 = vmul.f32 %v1168, %v792
        %v1170 = vand.u32 2147483647, %v792
        %vm1171 = vcmp.lt.f32.partialorder %v1170, 0.0004427343
        %v1172 = vsel %vm1171, %v1169, %v1166
        %v1173 = vadd.f32 %v794, 1.0
        %v1174 = vlog2.pop %v1173
        %v1175 = vmul.f32 %v1174, 0.6931472
        %v1176 = vmul.f32 -0.5, %v794
        %v1177 = vadd.f32 %v1176, 1.0
        %v1178 = vmul.f32 %v1177, %v794
        %v1179 = vand.u32 2147483647, %v794
        %vm1180 = vcmp.lt.f32.partialorder %v1179, 0.0004427343
        %v1181 = vsel %vm1180, %v1178, %v1175
        %v1182 = vadd.f32 %v796, 1.0
        %v1183 = vlog2.pop %v1182
        %v1184 = vmul.f32 %v1183, 0.6931472
        %v1185 = vmul.f32 -0.5, %v796
        %v1186 = vadd.f32 %v1185, 1.0
        %v1187 = vmul.f32 %v1186, %v796
        %v1188 = vand.u32 2147483647, %v796
        %vm1189 = vcmp.lt.f32.partialorder %v1188, 0.0004427343
        %v1190 = vsel %vm1189, %v1187, %v1184
        %v1191 = vadd.f32 %v798, 1.0
        %v1192 = vlog2.pop %v1191
        %v1193 = vmul.f32 %v1192, 0.6931472
        %v1194 = vmul.f32 -0.5, %v798
        %v1195 = vadd.f32 %v1194, 1.0
        %v1196 = vmul.f32 %v1195, %v798
        %v1197 = vand.u32 2147483647, %v798
        %vm1198 = vcmp.lt.f32.partialorder %v1197, 0.0004427343
        %v1199 = vsel %vm1198, %v1196, %v1193
        %v1200 = vadd.f32 %v800, 1.0
        %v1201 = vlog2.pop %v1200
        %v1202 = vmul.f32 %v1201, 0.6931472
        %v1203 = vmul.f32 -0.5, %v800
        %v1204 = vadd.f32 %v1203, 1.0
        %v1205 = vmul.f32 %v1204, %v800
        %v1206 = vand.u32 2147483647, %v800
        %vm1207 = vcmp.lt.f32.partialorder %v1206, 0.0004427343
        %v1208 = vsel %vm1207, %v1205, %v1202
        %v1209 = vadd.f32 %v802, 1.0
        %v1210 = vlog2.pop %v1209
        %v1211 = vmul.f32 %v1210, 0.6931472
        %v1212 = vmul.f32 -0.5, %v802
        %v1213 = vadd.f32 %v1212, 1.0
        %v1214 = vmul.f32 %v1213, %v802
        %v1215 = vand.u32 2147483647, %v802
        %vm1216 = vcmp.lt.f32.partialorder %v1215, 0.0004427343
        %v1217 = vsel %vm1216, %v1214, %v1211
        %v1218 = vadd.f32 %v804, 1.0
        %v1219 = vlog2.pop %v1218
        %v1220 = vmul.f32 %v1219, 0.6931472
        %v1221 = vmul.f32 -0.5, %v804
        %v1222 = vadd.f32 %v1221, 1.0
        %v1223 = vmul.f32 %v1222, %v804
        %v1224 = vand.u32 2147483647, %v804
        %vm1225 = vcmp.lt.f32.partialorder %v1224, 0.0004427343
        %v1226 = vsel %vm1225, %v1223, %v1220
        %v1227 = vadd.f32 %v806, 1.0
        %v1228 = vlog2.pop %v1227
        %v1229 = vmul.f32 %v1228, 0.6931472
        %v1230 = vmul.f32 -0.5, %v806
        %v1231 = vadd.f32 %v1230, 1.0
        %v1232 = vmul.f32 %v1231, %v806
        %v1233 = vand.u32 2147483647, %v806
        %vm1234 = vcmp.lt.f32.partialorder %v1233, 0.0004427343
        %v1235 = vsel %vm1234, %v1232, %v1229
        %v1236 = vadd.f32 %v808, 1.0
        %v1237 = vlog2.pop %v1236
        %v1238 = vmul.f32 %v1237, 0.6931472
        %v1239 = vmul.f32 -0.5, %v808
        %v1240 = vadd.f32 %v1239, 1.0
        %v1241 = vmul.f32 %v1240, %v808
        %v1242 = vand.u32 2147483647, %v808
        %vm1243 = vcmp.lt.f32.partialorder %v1242, 0.0004427343
        %v1244 = vsel %vm1243, %v1241, %v1238
        %v1245 = vadd.f32 %v810, 1.0
        %v1246 = vlog2.pop %v1245
        %v1247 = vmul.f32 %v1246, 0.6931472
        %v1248 = vmul.f32 -0.5, %v810
        %v1249 = vadd.f32 %v1248, 1.0
        %v1250 = vmul.f32 %v1249, %v810
        %v1251 = vand.u32 2147483647, %v810
        %vm1252 = vcmp.lt.f32.partialorder %v1251, 0.0004427343
        %v1253 = vsel %vm1252, %v1250, %v1247
        %v1254 = vadd.f32 %v812, 1.0
        %v1255 = vlog2.pop %v1254
        %v1256 = vmul.f32 %v1255, 0.6931472
        %v1257 = vmul.f32 -0.5, %v812
        %v1258 = vadd.f32 %v1257, 1.0
        %v1259 = vmul.f32 %v1258, %v812
        %v1260 = vand.u32 2147483647, %v812
        %vm1261 = vcmp.lt.f32.partialorder %v1260, 0.0004427343
        %v1262 = vsel %vm1261, %v1259, %v1256
        %v1263 = vadd.f32 %v814, 1.0
        %v1264 = vlog2.pop %v1263
        %v1265 = vmul.f32 %v1264, 0.6931472
        %v1266 = vmul.f32 -0.5, %v814
        %v1267 = vadd.f32 %v1266, 1.0
        %v1268 = vmul.f32 %v1267, %v814
        %v1269 = vand.u32 2147483647, %v814
        %vm1270 = vcmp.lt.f32.partialorder %v1269, 0.0004427343
        %v1271 = vsel %vm1270, %v1268, %v1265
        %v1272 = vadd.f32 %v816, 1.0
        %v1273 = vlog2.pop %v1272
        %v1274 = vmul.f32 %v1273, 0.6931472
        %v1275 = vmul.f32 -0.5, %v816
        %v1276 = vadd.f32 %v1275, 1.0
        %v1277 = vmul.f32 %v1276, %v816
        %v1278 = vand.u32 2147483647, %v816
        %vm1279 = vcmp.lt.f32.partialorder %v1278, 0.0004427343
        %v1280 = vsel %vm1279, %v1277, %v1274
        %v1281 = vadd.f32 %v818, 1.0
        %v1282 = vlog2.pop %v1281
        %v1283 = vmul.f32 %v1282, 0.6931472
        %v1284 = vmul.f32 -0.5, %v818
        %v1285 = vadd.f32 %v1284, 1.0
        %v1286 = vmul.f32 %v1285, %v818
        %v1287 = vand.u32 2147483647, %v818
        %vm1288 = vcmp.lt.f32.partialorder %v1287, 0.0004427343
        %v1289 = vsel %vm1288, %v1286, %v1283
        %v1290 = vadd.f32 %v820, 1.0
        %v1291 = vlog2.pop %v1290
        %v1292 = vmul.f32 %v1291, 0.6931472
        %v1293 = vmul.f32 -0.5, %v820
        %v1294 = vadd.f32 %v1293, 1.0
        %v1295 = vmul.f32 %v1294, %v820
        %v1296 = vand.u32 2147483647, %v820
        %vm1297 = vcmp.lt.f32.partialorder %v1296, 0.0004427343
        %v1298 = vsel %vm1297, %v1295, %v1292
        %v1299 = vadd.f32 %v822, 1.0
        %v1300 = vlog2.pop %v1299
        %v1301 = vmul.f32 %v1300, 0.6931472
        %v1302 = vmul.f32 -0.5, %v822
        %v1303 = vadd.f32 %v1302, 1.0
        %v1304 = vmul.f32 %v1303, %v822
        %v1305 = vand.u32 2147483647, %v822
        %vm1306 = vcmp.lt.f32.partialorder %v1305, 0.0004427343
        %v1307 = vsel %vm1306, %v1304, %v1301
        %v1308 = vadd.f32 %v824, 1.0
        %v1309 = vlog2.pop %v1308
        %v1310 = vmul.f32 %v1309, 0.6931472
        %v1311 = vmul.f32 -0.5, %v824
        %v1312 = vadd.f32 %v1311, 1.0
        %v1313 = vmul.f32 %v1312, %v824
        %v1314 = vand.u32 2147483647, %v824
        %vm1315 = vcmp.lt.f32.partialorder %v1314, 0.0004427343
        %v1316 = vsel %vm1315, %v1313, %v1310
        %v1317 = vadd.f32 %v826, 1.0
        %v1318 = vlog2.pop %v1317
        %v1319 = vmul.f32 %v1318, 0.6931472
        %v1320 = vmul.f32 -0.5, %v826
        %v1321 = vadd.f32 %v1320, 1.0
        %v1322 = vmul.f32 %v1321, %v826
        %v1323 = vand.u32 2147483647, %v826
        %vm1324 = vcmp.lt.f32.partialorder %v1323, 0.0004427343
        %v1325 = vsel %vm1324, %v1322, %v1319
        %v1326 = vadd.f32 %v828, 1.0
        %v1327 = vlog2.pop %v1326
        %v1328 = vmul.f32 %v1327, 0.6931472
        %v1329 = vmul.f32 -0.5, %v828
        %v1330 = vadd.f32 %v1329, 1.0
        %v1331 = vmul.f32 %v1330, %v828
        %v1332 = vand.u32 2147483647, %v828
        %vm1333 = vcmp.lt.f32.partialorder %v1332, 0.0004427343
        %v1334 = vsel %vm1333, %v1331, %v1328
        %v1335 = vadd.f32 %v830, 1.0
        %v1336 = vlog2.pop %v1335
        %v1337 = vmul.f32 %v1336, 0.6931472
        %v1338 = vmul.f32 -0.5, %v830
        %v1339 = vadd.f32 %v1338, 1.0
        %v1340 = vmul.f32 %v1339, %v830
        %v1341 = vand.u32 2147483647, %v830
        %vm1342 = vcmp.lt.f32.partialorder %v1341, 0.0004427343
        %v1343 = vsel %vm1342, %v1340, %v1337
        %v1344 = vadd.f32 %v832, 1.0
        %v1345 = vlog2.pop %v1344
        %v1346 = vmul.f32 %v1345, 0.6931472
        %v1347 = vmul.f32 -0.5, %v832
        %v1348 = vadd.f32 %v1347, 1.0
        %v1349 = vmul.f32 %v1348, %v832
        %v1350 = vand.u32 2147483647, %v832
        %vm1351 = vcmp.lt.f32.partialorder %v1350, 0.0004427343
        %v1352 = vsel %vm1351, %v1349, %v1346
        %v1353 = vadd.f32 %v834, 1.0
        %v1354 = vlog2.pop %v1353
        %v1355 = vmul.f32 %v1354, 0.6931472
        %v1356 = vmul.f32 -0.5, %v834
        %v1357 = vadd.f32 %v1356, 1.0
        %v1358 = vmul.f32 %v1357, %v834
        %v1359 = vand.u32 2147483647, %v834
        %vm1360 = vcmp.lt.f32.partialorder %v1359, 0.0004427343
        %v1361 = vsel %vm1360, %v1358, %v1355
        %v1362 = vadd.f32 %v836, 1.0
        %v1363 = vlog2.pop %v1362
        %v1364 = vmul.f32 %v1363, 0.6931472
        %v1365 = vmul.f32 -0.5, %v836
        %v1366 = vadd.f32 %v1365, 1.0
        %v1367 = vmul.f32 %v1366, %v836
        %v1368 = vand.u32 2147483647, %v836
        %vm1369 = vcmp.lt.f32.partialorder %v1368, 0.0004427343
        %v1370 = vsel %vm1369, %v1367, %v1364
        %v1371 = vadd.f32 %v838, 1.0
        %v1372 = vlog2.pop %v1371
        %v1373 = vmul.f32 %v1372, 0.6931472
        %v1374 = vmul.f32 -0.5, %v838
        %v1375 = vadd.f32 %v1374, 1.0
        %v1376 = vmul.f32 %v1375, %v838
        %v1377 = vand.u32 2147483647, %v838
        %vm1378 = vcmp.lt.f32.partialorder %v1377, 0.0004427343
        %v1379 = vsel %vm1378, %v1376, %v1373
        %v1380 = vadd.f32 %v840, 1.0
        %v1381 = vlog2.pop %v1380
        %v1382 = vmul.f32 %v1381, 0.6931472
        %v1383 = vmul.f32 -0.5, %v840
        %v1384 = vadd.f32 %v1383, 1.0
        %v1385 = vmul.f32 %v1384, %v840
        %v1386 = vand.u32 2147483647, %v840
        %vm1387 = vcmp.lt.f32.partialorder %v1386, 0.0004427343
        %v1388 = vsel %vm1387, %v1385, %v1382
        %v1389 = vadd.f32 %v842, 1.0
        %v1390 = vlog2.pop %v1389
        %v1391 = vmul.f32 %v1390, 0.6931472
        %v1392 = vmul.f32 -0.5, %v842
        %v1393 = vadd.f32 %v1392, 1.0
        %v1394 = vmul.f32 %v1393, %v842
        %v1395 = vand.u32 2147483647, %v842
        %vm1396 = vcmp.lt.f32.partialorder %v1395, 0.0004427343
        %v1397 = vsel %vm1396, %v1394, %v1391
        %v1398 = vadd.f32 %v844, 1.0
        %v1399 = vlog2.pop %v1398
        %v1400 = vmul.f32 %v1399, 0.6931472
        %v1401 = vmul.f32 -0.5, %v844
        %v1402 = vadd.f32 %v1401, 1.0
        %v1403 = vmul.f32 %v1402, %v844
        %v1404 = vand.u32 2147483647, %v844
        %vm1405 = vcmp.lt.f32.partialorder %v1404, 0.0004427343
        %v1406 = vsel %vm1405, %v1403, %v1400
        %v1407 = vadd.f32 %v846, 1.0
        %v1408 = vlog2.pop %v1407
        %v1409 = vmul.f32 %v1408, 0.6931472
        %v1410 = vmul.f32 -0.5, %v846
        %v1411 = vadd.f32 %v1410, 1.0
        %v1412 = vmul.f32 %v1411, %v846
        %v1413 = vand.u32 2147483647, %v846
        %vm1414 = vcmp.lt.f32.partialorder %v1413, 0.0004427343
        %v1415 = vsel %vm1414, %v1412, %v1409
        %v1416 = vadd.f32 %v848, 1.0
        %v1417 = vlog2.pop %v1416
        %v1418 = vmul.f32 %v1417, 0.6931472
        %v1419 = vmul.f32 -0.5, %v848
        %v1420 = vadd.f32 %v1419, 1.0
        %v1421 = vmul.f32 %v1420, %v848
        %v1422 = vand.u32 2147483647, %v848
        %vm1423 = vcmp.lt.f32.partialorder %v1422, 0.0004427343
        %v1424 = vsel %vm1423, %v1421, %v1418
        %v1425 = vadd.f32 %v529, %v857
        %v1426 = vadd.f32 %v530, %v866
        %v1427 = vadd.f32 %v531, %v875
        %v1428 = vadd.f32 %v532, %v884
        %v1429 = vadd.f32 %v533, %v893
        %v1430 = vadd.f32 %v534, %v902
        %v1431 = vadd.f32 %v535, %v911
        %v1432 = vadd.f32 %v536, %v920
        %v1433 = vadd.f32 %v537, %v929
        %v1434 = vadd.f32 %v538, %v938
        %v1435 = vadd.f32 %v539, %v947
        %v1436 = vadd.f32 %v540, %v956
        %v1437 = vadd.f32 %v541, %v965
        %v1438 = vadd.f32 %v542, %v974
        %v1439 = vadd.f32 %v543, %v983
        %v1440 = vadd.f32 %v544, %v992
        %v1441 = vadd.f32 %v545, %v1001
        %v1442 = vadd.f32 %v546, %v1010
        %v1443 = vadd.f32 %v547, %v1019
        %v1444 = vadd.f32 %v548, %v1028
        %v1445 = vadd.f32 %v549, %v1037
        %v1446 = vadd.f32 %v550, %v1046
        %v1447 = vadd.f32 %v551, %v1055
        %v1448 = vadd.f32 %v552, %v1064
        %v1449 = vadd.f32 %v553, %v1073
        %v1450 = vadd.f32 %v554, %v1082
        %v1451 = vadd.f32 %v555, %v1091
        %v1452 = vadd.f32 %v556, %v1100
        %v1453 = vadd.f32 %v557, %v1109
        %v1454 = vadd.f32 %v558, %v1118
        %v1455 = vadd.f32 %v559, %v1127
        %v1456 = vadd.f32 %v560, %v1136
        %v1457 = vadd.f32 %v561, %v1145
        %v1458 = vadd.f32 %v562, %v1154
        %v1459 = vadd.f32 %v563, %v1163
        %v1460 = vadd.f32 %v564, %v1172
        %v1461 = vadd.f32 %v565, %v1181
        %v1462 = vadd.f32 %v566, %v1190
        %v1463 = vadd.f32 %v567, %v1199
        %v1464 = vadd.f32 %v568, %v1208
        %v1465 = vadd.f32 %v569, %v1217
        %v1466 = vadd.f32 %v570, %v1226
        %v1467 = vadd.f32 %v571, %v1235
        %v1468 = vadd.f32 %v572, %v1244
        %v1469 = vadd.f32 %v573, %v1253
        %v1470 = vadd.f32 %v574, %v1262
        %v1471 = vadd.f32 %v575, %v1271
        %v1472 = vadd.f32 %v576, %v1280
        %v1473 = vadd.f32 %v577, %v1289
        %v1474 = vadd.f32 %v578, %v1298
        %v1475 = vadd.f32 %v579, %v1307
        %v1476 = vadd.f32 %v580, %v1316
        %v1477 = vadd.f32 %v581, %v1325
        %v1478 = vadd.f32 %v582, %v1334
        %v1479 = vadd.f32 %v583, %v1343
        %v1480 = vadd.f32 %v584, %v1352
        %v1481 = vadd.f32 %v585, %v1361
        %v1482 = vadd.f32 %v586, %v1370
        %v1483 = vadd.f32 %v587, %v1379
        %v1484 = vadd.f32 %v588, %v1388
        %v1485 = vadd.f32 %v589, %v1397
        %v1486 = vadd.f32 %v590, %v1406
        %v1487 = vadd.f32 %v591, %v1415
        %v1488 = vadd.f32 %v592, %v1424
        %v1489 = vld [vmem:[#allocation2] sm:$0xff]
        %v1490 = vld [vmem:[#allocation2 + $0x8] sm:$0xff]
        %v1491 = vld [vmem:[#allocation2 + $0x10] sm:$0xff]
        %v1492 = vld [vmem:[#allocation2 + $0x18] sm:$0xff]
        %v1493 = vld [vmem:[#allocation2 + $0x20] sm:$0xff]
        %v1494 = vld [vmem:[#allocation2 + $0x28] sm:$0xff]
        %v1495 = vld [vmem:[#allocation2 + $0x30] sm:$0xff]
        %v1496 = vld [vmem:[#allocation2 + $0x38] sm:$0xff]
        %v1497 = vld [vmem:[#allocation2 + $0x40] sm:$0xff]
        %v1498 = vld [vmem:[#allocation2 + $0x48] sm:$0xff]
        %v1499 = vld [vmem:[#allocation2 + $0x50] sm:$0xff]
        %v1500 = vld [vmem:[#allocation2 + $0x58] sm:$0xff]
        %v1501 = vld [vmem:[#allocation2 + $0x60] sm:$0xff]
        %v1502 = vld [vmem:[#allocation2 + $0x68] sm:$0xff]
        %v1503 = vld [vmem:[#allocation2 + $0x70] sm:$0xff]
        %v1504 = vld [vmem:[#allocation2 + $0x78] sm:$0xff]
        %v1505 = vld [vmem:[#allocation2 + $0x80] sm:$0xff]
        %v1506 = vld [vmem:[#allocation2 + $0x88] sm:$0xff]
        %v1507 = vld [vmem:[#allocation2 + $0x90] sm:$0xff]
        %v1508 = vld [vmem:[#allocation2 + $0x98] sm:$0xff]
        %v1509 = vld [vmem:[#allocation2 + $0xa0] sm:$0xff]
        %v1510 = vld [vmem:[#allocation2 + $0xa8] sm:$0xff]
        %v1511 = vld [vmem:[#allocation2 + $0xb0] sm:$0xff]
        %v1512 = vld [vmem:[#allocation2 + $0xb8] sm:$0xff]
        %v1513 = vld [vmem:[#allocation2 + $0xc0] sm:$0xff]
        %v1514 = vld [vmem:[#allocation2 + $0xc8] sm:$0xff]
        %v1515 = vld [vmem:[#allocation2 + $0xd0] sm:$0xff]
        %v1516 = vld [vmem:[#allocation2 + $0xd8] sm:$0xff]
        %v1517 = vld [vmem:[#allocation2 + $0xe0] sm:$0xff]
        %v1518 = vld [vmem:[#allocation2 + $0xe8] sm:$0xff]
        %v1519 = vld [vmem:[#allocation2 + $0xf0] sm:$0xff]
        %v1520 = vld [vmem:[#allocation2 + $0xf8] sm:$0xff]
        %v1521 = vld [vmem:[#allocation2 + $0x100] sm:$0xff]
        %v1522 = vld [vmem:[#allocation2 + $0x108] sm:$0xff]
        %v1523 = vld [vmem:[#allocation2 + $0x110] sm:$0xff]
        %v1524 = vld [vmem:[#allocation2 + $0x118] sm:$0xff]
        %v1525 = vld [vmem:[#allocation2 + $0x120] sm:$0xff]
        %v1526 = vld [vmem:[#allocation2 + $0x128] sm:$0xff]
        %v1527 = vld [vmem:[#allocation2 + $0x130] sm:$0xff]
        %v1528 = vld [vmem:[#allocation2 + $0x138] sm:$0xff]
        %v1529 = vld [vmem:[#allocation2 + $0x140] sm:$0xff]
        %v1530 = vld [vmem:[#allocation2 + $0x148] sm:$0xff]
        %v1531 = vld [vmem:[#allocation2 + $0x150] sm:$0xff]
        %v1532 = vld [vmem:[#allocation2 + $0x158] sm:$0xff]
        %v1533 = vld [vmem:[#allocation2 + $0x160] sm:$0xff]
        %v1534 = vld [vmem:[#allocation2 + $0x168] sm:$0xff]
        %v1535 = vld [vmem:[#allocation2 + $0x170] sm:$0xff]
        %v1536 = vld [vmem:[#allocation2 + $0x178] sm:$0xff]
        %v1537 = vld [vmem:[#allocation2 + $0x180] sm:$0xff]
        %v1538 = vld [vmem:[#allocation2 + $0x188] sm:$0xff]
        %v1539 = vld [vmem:[#allocation2 + $0x190] sm:$0xff]
        %v1540 = vld [vmem:[#allocation2 + $0x198] sm:$0xff]
        %v1541 = vld [vmem:[#allocation2 + $0x1a0] sm:$0xff]
        %v1542 = vld [vmem:[#allocation2 + $0x1a8] sm:$0xff]
        %v1543 = vld [vmem:[#allocation2 + $0x1b0] sm:$0xff]
        %v1544 = vld [vmem:[#allocation2 + $0x1b8] sm:$0xff]
        %v1545 = vld [vmem:[#allocation2 + $0x1c0] sm:$0xff]
        %v1546 = vld [vmem:[#allocation2 + $0x1c8] sm:$0xff]
        %v1547 = vld [vmem:[#allocation2 + $0x1d0] sm:$0xff]
        %v1548 = vld [vmem:[#allocation2 + $0x1d8] sm:$0xff]
        %v1549 = vld [vmem:[#allocation2 + $0x1e0] sm:$0xff]
        %v1550 = vld [vmem:[#allocation2 + $0x1e8] sm:$0xff]
        %v1551 = vld [vmem:[#allocation2 + $0x1f0] sm:$0xff]
        %v1552 = vld [vmem:[#allocation2 + $0x1f8] sm:$0xff]
        %s1553 = sld [smem:[#allocation4 + %s29]]
        %v1554 = vstv %s1553
        %v1555 = vmul.f32 %v1425, %v1554
        %v1556 = vmul.f32 %v1426, %v1554
        %v1557 = vmul.f32 %v1427, %v1554
        %v1558 = vmul.f32 %v1428, %v1554
        %v1559 = vmul.f32 %v1429, %v1554
        %v1560 = vmul.f32 %v1430, %v1554
        %v1561 = vmul.f32 %v1431, %v1554
        %v1562 = vmul.f32 %v1432, %v1554
        %v1563 = vmul.f32 %v1433, %v1554
        %v1564 = vmul.f32 %v1434, %v1554
        %v1565 = vmul.f32 %v1435, %v1554
        %v1566 = vmul.f32 %v1436, %v1554
        %v1567 = vmul.f32 %v1437, %v1554
        %v1568 = vmul.f32 %v1438, %v1554
        %v1569 = vmul.f32 %v1439, %v1554
        %v1570 = vmul.f32 %v1440, %v1554
        %v1571 = vmul.f32 %v1441, %v1554
        %v1572 = vmul.f32 %v1442, %v1554
        %v1573 = vmul.f32 %v1443, %v1554
        %v1574 = vmul.f32 %v1444, %v1554
        %v1575 = vmul.f32 %v1445, %v1554
        %v1576 = vmul.f32 %v1446, %v1554
        %v1577 = vmul.f32 %v1447, %v1554
        %v1578 = vmul.f32 %v1448, %v1554
        %v1579 = vmul.f32 %v1449, %v1554
        %v1580 = vmul.f32 %v1450, %v1554
        %v1581 = vmul.f32 %v1451, %v1554
        %v1582 = vmul.f32 %v1452, %v1554
        %v1583 = vmul.f32 %v1453, %v1554
        %v1584 = vmul.f32 %v1454, %v1554
        %v1585 = vmul.f32 %v1455, %v1554
        %v1586 = vmul.f32 %v1456, %v1554
        %v1587 = vmul.f32 %v1457, %v1554
        %v1588 = vmul.f32 %v1458, %v1554
        %v1589 = vmul.f32 %v1459, %v1554
        %v1590 = vmul.f32 %v1460, %v1554
        %v1591 = vmul.f32 %v1461, %v1554
        %v1592 = vmul.f32 %v1462, %v1554
        %v1593 = vmul.f32 %v1463, %v1554
        %v1594 = vmul.f32 %v1464, %v1554
        %v1595 = vmul.f32 %v1465, %v1554
        %v1596 = vmul.f32 %v1466, %v1554
        %v1597 = vmul.f32 %v1467, %v1554
        %v1598 = vmul.f32 %v1468, %v1554
        %v1599 = vmul.f32 %v1469, %v1554
        %v1600 = vmul.f32 %v1470, %v1554
        %v1601 = vmul.f32 %v1471, %v1554
        %v1602 = vmul.f32 %v1472, %v1554
        %v1603 = vmul.f32 %v1473, %v1554
        %v1604 = vmul.f32 %v1474, %v1554
        %v1605 = vmul.f32 %v1475, %v1554
        %v1606 = vmul.f32 %v1476, %v1554
        %v1607 = vmul.f32 %v1477, %v1554
        %v1608 = vmul.f32 %v1478, %v1554
        %v1609 = vmul.f32 %v1479, %v1554
        %v1610 = vmul.f32 %v1480, %v1554
        %v1611 = vmul.f32 %v1481, %v1554
        %v1612 = vmul.f32 %v1482, %v1554
        %v1613 = vmul.f32 %v1483, %v1554
        %v1614 = vmul.f32 %v1484, %v1554
        %v1615 = vmul.f32 %v1485, %v1554
        %v1616 = vmul.f32 %v1486, %v1554
        %v1617 = vmul.f32 %v1487, %v1554
        %v1618 = vmul.f32 %v1488, %v1554
        %v1619 = vadd.f32 %v1489, %v1555
        %v1620 = vadd.f32 %v1490, %v1556
        %v1621 = vadd.f32 %v1491, %v1557
        %v1622 = vadd.f32 %v1492, %v1558
        %v1623 = vadd.f32 %v1493, %v1559
        %v1624 = vadd.f32 %v1494, %v1560
        %v1625 = vadd.f32 %v1495, %v1561
        %v1626 = vadd.f32 %v1496, %v1562
        %v1627 = vadd.f32 %v1497, %v1563
        %v1628 = vadd.f32 %v1498, %v1564
        %v1629 = vadd.f32 %v1499, %v1565
        %v1630 = vadd.f32 %v1500, %v1566
        %v1631 = vadd.f32 %v1501, %v1567
        %v1632 = vadd.f32 %v1502, %v1568
        %v1633 = vadd.f32 %v1503, %v1569
        %v1634 = vadd.f32 %v1504, %v1570
        %v1635 = vadd.f32 %v1505, %v1571
        %v1636 = vadd.f32 %v1506, %v1572
        %v1637 = vadd.f32 %v1507, %v1573
        %v1638 = vadd.f32 %v1508, %v1574
        %v1639 = vadd.f32 %v1509, %v1575
        %v1640 = vadd.f32 %v1510, %v1576
        %v1641 = vadd.f32 %v1511, %v1577
        %v1642 = vadd.f32 %v1512, %v1578
        %v1643 = vadd.f32 %v1513, %v1579
        %v1644 = vadd.f32 %v1514, %v1580
        %v1645 = vadd.f32 %v1515, %v1581
        %v1646 = vadd.f32 %v1516, %v1582
        %v1647 = vadd.f32 %v1517, %v1583
        %v1648 = vadd.f32 %v1518, %v1584
        %v1649 = vadd.f32 %v1519, %v1585
        %v1650 = vadd.f32 %v1520, %v1586
        %v1651 = vadd.f32 %v1521, %v1587
        %v1652 = vadd.f32 %v1522, %v1588
        %v1653 = vadd.f32 %v1523, %v1589
        %v1654 = vadd.f32 %v1524, %v1590
        %v1655 = vadd.f32 %v1525, %v1591
        %v1656 = vadd.f32 %v1526, %v1592
        %v1657 = vadd.f32 %v1527, %v1593
        %v1658 = vadd.f32 %v1528, %v1594
        %v1659 = vadd.f32 %v1529, %v1595
        %v1660 = vadd.f32 %v1530, %v1596
        %v1661 = vadd.f32 %v1531, %v1597
        %v1662 = vadd.f32 %v1532, %v1598
        %v1663 = vadd.f32 %v1533, %v1599
        %v1664 = vadd.f32 %v1534, %v1600
        %v1665 = vadd.f32 %v1535, %v1601
        %v1666 = vadd.f32 %v1536, %v1602
        %v1667 = vadd.f32 %v1537, %v1603
        %v1668 = vadd.f32 %v1538, %v1604
        %v1669 = vadd.f32 %v1539, %v1605
        %v1670 = vadd.f32 %v1540, %v1606
        %v1671 = vadd.f32 %v1541, %v1607
        %v1672 = vadd.f32 %v1542, %v1608
        %v1673 = vadd.f32 %v1543, %v1609
        %v1674 = vadd.f32 %v1544, %v1610
        %v1675 = vadd.f32 %v1545, %v1611
        %v1676 = vadd.f32 %v1546, %v1612
        %v1677 = vadd.f32 %v1547, %v1613
        %v1678 = vadd.f32 %v1548, %v1614
        %v1679 = vadd.f32 %v1549, %v1615
        %v1680 = vadd.f32 %v1550, %v1616
        %v1681 = vadd.f32 %v1551, %v1617
        %v1682 = vadd.f32 %v1552, %v1618
        %1683 = vst [vmem:[#allocation2] sm:$0xff] %v1619
        %1684 = vst [vmem:[#allocation2 + $0x8] sm:$0xff] %v1620
        %1685 = vst [vmem:[#allocation2 + $0x10] sm:$0xff] %v1621
        %1686 = vst [vmem:[#allocation2 + $0x18] sm:$0xff] %v1622
        %1687 = vst [vmem:[#allocation2 + $0x20] sm:$0xff] %v1623
        %1688 = vst [vmem:[#allocation2 + $0x28] sm:$0xff] %v1624
        %1689 = vst [vmem:[#allocation2 + $0x30] sm:$0xff] %v1625
        %1690 = vst [vmem:[#allocation2 + $0x38] sm:$0xff] %v1626
        %1691 = vst [vmem:[#allocation2 + $0x40] sm:$0xff] %v1627
        %1692 = vst [vmem:[#allocation2 + $0x48] sm:$0xff] %v1628
        %1693 = vst [vmem:[#allocation2 + $0x50] sm:$0xff] %v1629
        %1694 = vst [vmem:[#allocation2 + $0x58] sm:$0xff] %v1630
        %1695 = vst [vmem:[#allocation2 + $0x60] sm:$0xff] %v1631
        %1696 = vst [vmem:[#allocation2 + $0x68] sm:$0xff] %v1632
        %1697 = vst [vmem:[#allocation2 + $0x70] sm:$0xff] %v1633
        %1698 = vst [vmem:[#allocation2 + $0x78] sm:$0xff] %v1634
        %1699 = vst [vmem:[#allocation2 + $0x80] sm:$0xff] %v1635
        %1700 = vst [vmem:[#allocation2 + $0x88] sm:$0xff] %v1636
        %1701 = vst [vmem:[#allocation2 + $0x90] sm:$0xff] %v1637
        %1702 = vst [vmem:[#allocation2 + $0x98] sm:$0xff] %v1638
        %1703 = vst [vmem:[#allocation2 + $0xa0] sm:$0xff] %v1639
        %1704 = vst [vmem:[#allocation2 + $0xa8] sm:$0xff] %v1640
        %1705 = vst [vmem:[#allocation2 + $0xb0] sm:$0xff] %v1641
        %1706 = vst [vmem:[#allocation2 + $0xb8] sm:$0xff] %v1642
        %1707 = vst [vmem:[#allocation2 + $0xc0] sm:$0xff] %v1643
        %1708 = vst [vmem:[#allocation2 + $0xc8] sm:$0xff] %v1644
        %1709 = vst [vmem:[#allocation2 + $0xd0] sm:$0xff] %v1645
        %1710 = vst [vmem:[#allocation2 + $0xd8] sm:$0xff] %v1646
        %1711 = vst [vmem:[#allocation2 + $0xe0] sm:$0xff] %v1647
        %1712 = vst [vmem:[#allocation2 + $0xe8] sm:$0xff] %v1648
        %1713 = vst [vmem:[#allocation2 + $0xf0] sm:$0xff] %v1649
        %1714 = vst [vmem:[#allocation2 + $0xf8] sm:$0xff] %v1650
        %1715 = vst [vmem:[#allocation2 + $0x100] sm:$0xff] %v1651
        %1716 = vst [vmem:[#allocation2 + $0x108] sm:$0xff] %v1652
        %1717 = vst [vmem:[#allocation2 + $0x110] sm:$0xff] %v1653
        %1718 = vst [vmem:[#allocation2 + $0x118] sm:$0xff] %v1654
        %1719 = vst [vmem:[#allocation2 + $0x120] sm:$0xff] %v1655
        %1720 = vst [vmem:[#allocation2 + $0x128] sm:$0xff] %v1656
        %1721 = vst [vmem:[#allocation2 + $0x130] sm:$0xff] %v1657
        %1722 = vst [vmem:[#allocation2 + $0x138] sm:$0xff] %v1658
        %1723 = vst [vmem:[#allocation2 + $0x140] sm:$0xff] %v1659
        %1724 = vst [vmem:[#allocation2 + $0x148] sm:$0xff] %v1660
        %1725 = vst [vmem:[#allocation2 + $0x150] sm:$0xff] %v1661
        %1726 = vst [vmem:[#allocation2 + $0x158] sm:$0xff] %v1662
        %1727 = vst [vmem:[#allocation2 + $0x160] sm:$0xff] %v1663
        %1728 = vst [vmem:[#allocation2 + $0x168] sm:$0xff] %v1664
        %1729 = vst [vmem:[#allocation2 + $0x170] sm:$0xff] %v1665
        %1730 = vst [vmem:[#allocation2 + $0x178] sm:$0xff] %v1666
        %1731 = vst [vmem:[#allocation2 + $0x180] sm:$0xff] %v1667
        %1732 = vst [vmem:[#allocation2 + $0x188] sm:$0xff] %v1668
        %1733 = vst [vmem:[#allocation2 + $0x190] sm:$0xff] %v1669
        %1734 = vst [vmem:[#allocation2 + $0x198] sm:$0xff] %v1670
        %1735 = vst [vmem:[#allocation2 + $0x1a0] sm:$0xff] %v1671
        %1736 = vst [vmem:[#allocation2 + $0x1a8] sm:$0xff] %v1672
        %1737 = vst [vmem:[#allocation2 + $0x1b0] sm:$0xff] %v1673
        %1738 = vst [vmem:[#allocation2 + $0x1b8] sm:$0xff] %v1674
        %1739 = vst [vmem:[#allocation2 + $0x1c0] sm:$0xff] %v1675
        %1740 = vst [vmem:[#allocation2 + $0x1c8] sm:$0xff] %v1676
        %1741 = vst [vmem:[#allocation2 + $0x1d0] sm:$0xff] %v1677
        %1742 = vst [vmem:[#allocation2 + $0x1d8] sm:$0xff] %v1678
        %1743 = vst [vmem:[#allocation2 + $0x1e0] sm:$0xff] %v1679
        %1744 = vst [vmem:[#allocation2 + $0x1e8] sm:$0xff] %v1680
        %1745 = vst [vmem:[#allocation2 + $0x1f0] sm:$0xff] %v1681
        %1746 = vst [vmem:[#allocation2 + $0x1f8] sm:$0xff] %v1682
        %p1747 = scmp.eq.s32.totalorder %s29, 4
        // Predicated region
        $region41: #{tpu_custom_call.1} parent=27 // pred_check
          %p1748 = pneg %p1747
        $region42: #{tpu_custom_call.1} parent=27 // pred_check_branch
          %1750 = sbr.rel (%p1748) target = $region44
        $region43: #{tpu_custom_call.1} parent=27 // pred_region
          %v1751 = vld [vmem:[#allocation2] sm:$0xff]
          %v1752 = vld [vmem:[#allocation2 + $0x8] sm:$0xff]
          %v1753 = vld [vmem:[#allocation2 + $0x10] sm:$0xff]
          %v1754 = vld [vmem:[#allocation2 + $0x18] sm:$0xff]
          %v1755 = vld [vmem:[#allocation2 + $0x20] sm:$0xff]
          %v1756 = vld [vmem:[#allocation2 + $0x28] sm:$0xff]
          %v1757 = vld [vmem:[#allocation2 + $0x30] sm:$0xff]
          %v1758 = vld [vmem:[#allocation2 + $0x38] sm:$0xff]
          %v1759 = vld [vmem:[#allocation2 + $0x40] sm:$0xff]
          %v1760 = vld [vmem:[#allocation2 + $0x48] sm:$0xff]
          %v1761 = vld [vmem:[#allocation2 + $0x50] sm:$0xff]
          %v1762 = vld [vmem:[#allocation2 + $0x58] sm:$0xff]
          %v1763 = vld [vmem:[#allocation2 + $0x60] sm:$0xff]
          %v1764 = vld [vmem:[#allocation2 + $0x68] sm:$0xff]
          %v1765 = vld [vmem:[#allocation2 + $0x70] sm:$0xff]
          %v1766 = vld [vmem:[#allocation2 + $0x78] sm:$0xff]
          %v1767 = vld [vmem:[#allocation2 + $0x80] sm:$0xff]
          %v1768 = vld [vmem:[#allocation2 + $0x88] sm:$0xff]
          %v1769 = vld [vmem:[#allocation2 + $0x90] sm:$0xff]
          %v1770 = vld [vmem:[#allocation2 + $0x98] sm:$0xff]
          %v1771 = vld [vmem:[#allocation2 + $0xa0] sm:$0xff]
          %v1772 = vld [vmem:[#allocation2 + $0xa8] sm:$0xff]
          %v1773 = vld [vmem:[#allocation2 + $0xb0] sm:$0xff]
          %v1774 = vld [vmem:[#allocation2 + $0xb8] sm:$0xff]
          %v1775 = vld [vmem:[#allocation2 + $0xc0] sm:$0xff]
          %v1776 = vld [vmem:[#allocation2 + $0xc8] sm:$0xff]
          %v1777 = vld [vmem:[#allocation2 + $0xd0] sm:$0xff]
          %v1778 = vld [vmem:[#allocation2 + $0xd8] sm:$0xff]
          %v1779 = vld [vmem:[#allocation2 + $0xe0] sm:$0xff]
          %v1780 = vld [vmem:[#allocation2 + $0xe8] sm:$0xff]
          %v1781 = vld [vmem:[#allocation2 + $0xf0] sm:$0xff]
          %v1782 = vld [vmem:[#allocation2 + $0xf8] sm:$0xff]
          %v1783 = vld [vmem:[#allocation2 + $0x100] sm:$0xff]
          %v1784 = vld [vmem:[#allocation2 + $0x108] sm:$0xff]
          %v1785 = vld [vmem:[#allocation2 + $0x110] sm:$0xff]
          %v1786 = vld [vmem:[#allocation2 + $0x118] sm:$0xff]
          %v1787 = vld [vmem:[#allocation2 + $0x120] sm:$0xff]
          %v1788 = vld [vmem:[#allocation2 + $0x128] sm:$0xff]
          %v1789 = vld [vmem:[#allocation2 + $0x130] sm:$0xff]
          %v1790 = vld [vmem:[#allocation2 + $0x138] sm:$0xff]
          %v1791 = vld [vmem:[#allocation2 + $0x140] sm:$0xff]
          %v1792 = vld [vmem:[#allocation2 + $0x148] sm:$0xff]
          %v1793 = vld [vmem:[#allocation2 + $0x150] sm:$0xff]
          %v1794 = vld [vmem:[#allocation2 + $0x158] sm:$0xff]
          %v1795 = vld [vmem:[#allocation2 + $0x160] sm:$0xff]
          %v1796 = vld [vmem:[#allocation2 + $0x168] sm:$0xff]
          %v1797 = vld [vmem:[#allocation2 + $0x170] sm:$0xff]
          %v1798 = vld [vmem:[#allocation2 + $0x178] sm:$0xff]
          %v1799 = vld [vmem:[#allocation2 + $0x180] sm:$0xff]
          %v1800 = vld [vmem:[#allocation2 + $0x188] sm:$0xff]
          %v1801 = vld [vmem:[#allocation2 + $0x190] sm:$0xff]
          %v1802 = vld [vmem:[#allocation2 + $0x198] sm:$0xff]
          %v1803 = vld [vmem:[#allocation2 + $0x1a0] sm:$0xff]
          %v1804 = vld [vmem:[#allocation2 + $0x1a8] sm:$0xff]
          %v1805 = vld [vmem:[#allocation2 + $0x1b0] sm:$0xff]
          %v1806 = vld [vmem:[#allocation2 + $0x1b8] sm:$0xff]
          %v1807 = vld [vmem:[#allocation2 + $0x1c0] sm:$0xff]
          %v1808 = vld [vmem:[#allocation2 + $0x1c8] sm:$0xff]
          %v1809 = vld [vmem:[#allocation2 + $0x1d0] sm:$0xff]
          %v1810 = vld [vmem:[#allocation2 + $0x1d8] sm:$0xff]
          %v1811 = vld [vmem:[#allocation2 + $0x1e0] sm:$0xff]
          %v1812 = vld [vmem:[#allocation2 + $0x1e8] sm:$0xff]
          %v1813 = vld [vmem:[#allocation2 + $0x1f0] sm:$0xff]
          %v1814 = vld [vmem:[#allocation2 + $0x1f8] sm:$0xff]
          %v1815 = vadd.f32 %v1751, %v1752
          %v1816 = vadd.f32 %v1815, %v1753
          %v1817 = vadd.f32 %v1816, %v1754
          %v1818 = vadd.f32 %v1817, %v1755
          %v1819 = vadd.f32 %v1818, %v1756
          %v1820 = vadd.f32 %v1819, %v1757
          %v1821 = vadd.f32 %v1820, %v1758
          %v1822 = vadd.f32 %v1821, %v1759
          %v1823 = vadd.f32 %v1822, %v1760
          %v1824 = vadd.f32 %v1823, %v1761
          %v1825 = vadd.f32 %v1824, %v1762
          %v1826 = vadd.f32 %v1825, %v1763
          %v1827 = vadd.f32 %v1826, %v1764
          %v1828 = vadd.f32 %v1827, %v1765
          %v1829 = vadd.f32 %v1828, %v1766
          %v1830 = vadd.f32 %v1829, %v1767
          %v1831 = vadd.f32 %v1830, %v1768
          %v1832 = vadd.f32 %v1831, %v1769
          %v1833 = vadd.f32 %v1832, %v1770
          %v1834 = vadd.f32 %v1833, %v1771
          %v1835 = vadd.f32 %v1834, %v1772
          %v1836 = vadd.f32 %v1835, %v1773
          %v1837 = vadd.f32 %v1836, %v1774
          %v1838 = vadd.f32 %v1837, %v1775
          %v1839 = vadd.f32 %v1838, %v1776
          %v1840 = vadd.f32 %v1839, %v1777
          %v1841 = vadd.f32 %v1840, %v1778
          %v1842 = vadd.f32 %v1841, %v1779
          %v1843 = vadd.f32 %v1842, %v1780
          %v1844 = vadd.f32 %v1843, %v1781
          %v1845 = vadd.f32 %v1844, %v1782
          %v1846 = vadd.f32 %v1845, %v1783
          %v1847 = vadd.f32 %v1846, %v1784
          %v1848 = vadd.f32 %v1847, %v1785
          %v1849 = vadd.f32 %v1848, %v1786
          %v1850 = vadd.f32 %v1849, %v1787
          %v1851 = vadd.f32 %v1850, %v1788
          %v1852 = vadd.f32 %v1851, %v1789
          %v1853 = vadd.f32 %v1852, %v1790
          %v1854 = vadd.f32 %v1853, %v1791
          %v1855 = vadd.f32 %v1854, %v1792
          %v1856 = vadd.f32 %v1855, %v1793
          %v1857 = vadd.f32 %v1856, %v1794
          %v1858 = vadd.f32 %v1857, %v1795
          %v1859 = vadd.f32 %v1858, %v1796
          %v1860 = vadd.f32 %v1859, %v1797
          %v1861 = vadd.f32 %v1860, %v1798
          %v1862 = vadd.f32 %v1861, %v1799
          %v1863 = vadd.f32 %v1862, %v1800
          %v1864 = vadd.f32 %v1863, %v1801
          %v1865 = vadd.f32 %v1864, %v1802
          %v1866 = vadd.f32 %v1865, %v1803
          %v1867 = vadd.f32 %v1866, %v1804
          %v1868 = vadd.f32 %v1867, %v1805
          %v1869 = vadd.f32 %v1868, %v1806
          %v1870 = vadd.f32 %v1869, %v1807
          %v1871 = vadd.f32 %v1870, %v1808
          %v1872 = vadd.f32 %v1871, %v1809
          %v1873 = vadd.f32 %v1872, %v1810
          %v1874 = vadd.f32 %v1873, %v1811
          %v1875 = vadd.f32 %v1874, %v1812
          %v1876 = vadd.f32 %v1875, %v1813
          %v1877 = vadd.f32 %v1876, %v1814
          %1878 = vadd.xlane.f32.xlu0 %v1877
          %v1879 = vpop.xlane.xlu0 %1878
          %v1880 = vrot.slane %v1879, 4
          %v1881 = vadd.f32 %v1879, %v1880
          %v1882 = vrot.slane %v1881, 2
          %v1883 = vadd.f32 %v1881, %v1882
          %v1884 = vrot.slane %v1883, 1
          %v1885 = vadd.f32 %v1883, %v1884
          %s1886 = vtos %v1885
          %s1887 = scalar_lea.smem [#allocation10], 0
          %1888 = sst [smem:[%s1887]] %s1886
        $region44: #{tpu_custom_call.1} parent=27 // pred_fallthru
          _
        // Predicated region
        $region45: #{tpu_custom_call.1} parent=27 // pred_check
          %p1889 = pneg %p94
        $region46: #{tpu_custom_call.1} parent=27 // pred_check_branch
          %1891 = sbr.rel (%p1889) target = $region48
        $region47: #{tpu_custom_call.1} parent=27 // pred_region
          %1893 = vsyncadd [#allocation7], 0
          %s1895 = sshll.u32 %s3, 4
          %s1896 = int_to_ptr.hbm [resolvable:$true] %s1895
          %1898 = dma.smem_to_hbm [#allocation10], 16, %s1896, [#allocation7]
        $region48: #{tpu_custom_call.1} parent=27 // pred_fallthru
          _
        // Predicated region
        $region49: #{tpu_custom_call.1} parent=27 // pred_check
          %p1899 = pneg %p94
        $region50: #{tpu_custom_call.1} parent=27 // pred_check_branch
          %1901 = sbr.rel (%p1899) target = $region52
        $region51: #{tpu_custom_call.1} parent=27 // pred_region
          %1903 = dma.done [#allocation7], 16
        $region52: #{tpu_custom_call.1} parent=27 // pred_fallthru
          _
        %1904 = sfence
      $region28: #{tpu_custom_call.1} parent=5 // pred_fallthru
        _
      %p1905 = scmp.le.s32.totalorder 2, %s24
      // Predicated region
      $region53: #{tpu_custom_call.1} parent=5 // pred_check
        %p1906 = pneg %p1905
      $region54: #{tpu_custom_call.1} parent=5 // pred_check_branch
        %1908 = sbr.rel (%p1906) target = $region56
      $region55: #{tpu_custom_call.1} parent=5 // pred_region
        %s1909 = ssub.s32 %s24, 2
      $region56: #{tpu_custom_call.1} parent=5 // pred_fallthru
        _
    $region6: #{tpu_custom_call.1} parent=1 // loop_footer
      %s28 = sadd.s32 1, %s24
    $region7: #{tpu_custom_call.1} parent=1 // loop_footer_branch
      %23 = sbr.rel target = $region3
    $region8: #{tpu_custom_call.1} parent=1 // loop_exit
      _
    %1910 = vsyncpa [#allocation6], 1
    %s1911 = scalar_lea.sflag [#allocation6], 1
    %1912 = vsyncpa %s1911, 1
    %1913 = vsyncpa [#allocation9], 1
    %s1914 = scalar_lea.sflag [#allocation9], 1
    %1915 = vsyncpa %s1914, 1
    %1916 = vsyncpa [#allocation7], 1
    %s1917 = scalar_lea.sflag [#allocation7], 1
    %1918 = vsyncpa %s1917, 1

</llo_original>
